<compile_context>
chip_gen: v6e
topology: v6e:2x2x1
jax: 0.10.0
libtpu: 0.0.40
codegen_flags: <defaults>
</compile_context>

<pallas_src>
import functools

import jax
import jax.numpy as jnp
from jax import lax
from jax.experimental import pallas as pl
from jax.experimental.pallas import tpu as pltpu


# --------------------------------------------------------------------------------------
# Kernels
# --------------------------------------------------------------------------------------
def _resident_kernel(q_ref, k_ref, v_ref, o_ref, *, block_kv, num_kv, recip_approx):
    """One q tile vs. fully VMEM-resident K/V; kv reduction is an in-kernel loop."""
    block_q, d = q_ref.shape
    q = q_ref[...]  # already in matmul dtype (cast once in the wrapper)

    def body(step, carry):
        m_prev, l_prev, acc_prev = carry
        start = pl.multiple_of(step * block_kv, block_kv)
        k = k_ref[pl.ds(start, block_kv), :]
        v = v_ref[pl.ds(start, block_kv), :]
        # S = Q K^T: contract the d axis of both operands directly (no K relayout).
        s = lax.dot_general(q, k, (((1,), (1,)), ((), ())),
                            preferred_element_type=jnp.float32)
        m_new = jnp.maximum(m_prev, s.max(axis=-1, keepdims=True))
        alpha = jnp.exp(m_prev - m_new)          # rescale factor for old stats (f32)
        p = jnp.exp(s - m_new)                   # un-normalized probabilities (f32)
        l_new = alpha * l_prev + p.sum(axis=-1, keepdims=True)
        acc_new = alpha * acc_prev + lax.dot_general(
            p.astype(v.dtype), v, (((1,), (0,)), ((), ())),
            preferred_element_type=jnp.float32)
        return m_new, l_new, acc_new

    init = (jnp.full((block_q, 1), -jnp.inf, jnp.float32),   # m_i
            jnp.zeros((block_q, 1), jnp.float32),            # l_i
            jnp.zeros((block_q, d), jnp.float32))            # acc
    unroll = 2 if (num_kv > 1 and num_kv % 2 == 0) else 1
    _, l_i, acc = lax.fori_loop(0, num_kv, body, init, unroll=unroll)

    # Epilogue: EUP reciprocal for bf16, exact reciprocal for the f32 path.
    o_ref[...] = (acc * pl.reciprocal(l_i, approx=recip_approx)).astype(o_ref.dtype)


def _streaming_kernel(q_ref, k_ref, v_ref, o_ref, m_sc, l_sc, acc_sc, *, recip_approx):
    """Streaming path: grid=(num_q, num_kv); kv is the reduction (output block fixed)."""
    kv = pl.program_id(1)

    @pl.when(kv == 0)
    def _init():
        m_sc[...] = jnp.full_like(m_sc, -jnp.inf)
        l_sc[...] = jnp.zeros_like(l_sc)
        acc_sc[...] = jnp.zeros_like(acc_sc)

    q = q_ref[...]
    k = k_ref[...]
    v = v_ref[...]
    s = lax.dot_general(q, k, (((1,), (1,)), ((), ())),
                        preferred_element_type=jnp.float32)
    m_prev = m_sc[...]
    m_new = jnp.maximum(m_prev, s.max(axis=-1, keepdims=True))
    alpha = jnp.exp(m_prev - m_new)
    p = jnp.exp(s - m_new)
    l_sc[...] = alpha * l_sc[...] + p.sum(axis=-1, keepdims=True)
    acc_sc[...] = alpha * acc_sc[...] + lax.dot_general(
        p.astype(v.dtype), v, (((1,), (0,)), ((), ())),
        preferred_element_type=jnp.float32)
    m_sc[...] = m_new

    @pl.when(kv == pl.num_programs(1) - 1)
    def _finalize():
        o_ref[...] = (acc_sc[...] * pl.reciprocal(l_sc[...], approx=recip_approx)
                      ).astype(o_ref.dtype)


# --------------------------------------------------------------------------------------
# Helpers
# --------------------------------------------------------------------------------------
def _vmem_budgets():
    """(vmem_limit_bytes, kv_resident_cap_bytes), generation-aware with a safe fallback."""
    cap = None
    try:
        cap = getattr(pltpu.get_tpu_info(), "vmem_capacity_bytes", None)
    except Exception:
        cap = None
    if not cap:
        # Conservative fallback — fits every generation incl. v7x's 64 MiB / TensorCore.
        return 32 * 1024 * 1024, 8 * 1024 * 1024
    cap = int(cap)
    vmem_limit = min(cap * 3 // 4, cap - 8 * 1024 * 1024)   # headroom under physical
    kv_cap = cap // 4   # resident K+V budget; per-TC on v7x (each core holds a copy)
    return vmem_limit, kv_cap


def _block_spec(block_shape, index_map, buffer_count=None):
    """BlockSpec, optionally with pipeline_mode=pl.Buffered(buffer_count)."""
    if buffer_count is not None and hasattr(pl, "Buffered"):
        try:
            return pl.BlockSpec(block_shape, index_map,
                                pipeline_mode=pl.Buffered(buffer_count))
        except TypeError:
            pass  # older jax without pipeline_mode kwarg
    return pl.BlockSpec(block_shape, index_map)


# --------------------------------------------------------------------------------------
# Wrapper
# --------------------------------------------------------------------------------------
def flash_attention_v2(Q, K, V, *, block_q=128, block_kv=256,
                       matmul_dtype=jnp.bfloat16,
                       vmem_limit_bytes=None,
                       kv_resident_max_bytes=None,
                       streaming_buffer_count=None):
    """softmax(Q @ K^T) @ V with NO 1/sqrt(d) scaling, matching the PyTorch module.

    Q, K, V: (n, d) arrays. Returns (n, d) float32 (like torch.zeros default dtype).
    """
    n, d = Q.shape
    assert K.shape == (n, d) and V.shape == (n, d)

    block_q = min(block_q, n)
    block_kv = min(block_kv, n)
    assert n % block_q == 0 and n % block_kv == 0, \
        "sequence length must be divisible by block_q / block_kv"
    assert block_kv == n or block_kv % 128 == 0, \
        "block_kv must be a multiple of 128 (or the full sequence length)"
    assert block_q % 8 == 0, "block_q must be a multiple of 8 (sublane tiling)"
    # TODO(synk): for very small head dims (d << 128) fold multiple heads into the last
    # dim of Q/K/V/O so the O stores stay lane-dense; single-head d is kept as-is here.

    auto_limit, auto_kv_cap = _vmem_budgets()
    if vmem_limit_bytes is None:
        vmem_limit_bytes = auto_limit
    if kv_resident_max_bytes is None:
        kv_resident_max_bytes = auto_kv_cap

    # One wrapper-side cast pass: bf16 MXU inputs, half the HBM/VMEM traffic of f32.
    Qc = Q.astype(matmul_dtype)
    Kc = K.astype(matmul_dtype)
    Vc = V.astype(matmul_dtype)

    num_q = n // block_q
    num_kv = n // block_kv

    # Residency threshold computed from the dtype actually stored in VMEM.
    kv_bytes = 2 * n * d * jnp.dtype(matmul_dtype).itemsize
    kv_resident = kv_bytes <= kv_resident_max_bytes

    recip_approx = bool(jnp.dtype(matmul_dtype) != jnp.float32)
    out_shape = jax.ShapeDtypeStruct((n, d), jnp.float32)

    if kv_resident:
        # ---- Resident fast path: single (parallel) grid axis, kv loop inside kernel.
        kernel = functools.partial(_resident_kernel, block_kv=block_kv, num_kv=num_kv,
                                   recip_approx=recip_approx)
        cparams = pltpu.CompilerParams(
            dimension_semantics=("parallel",),
            vmem_limit_bytes=vmem_limit_bytes)

        def _call(kv_buf_count):
            return pl.pallas_call(
                kernel,
                out_shape=out_shape,
                grid_spec=pltpu.PrefetchScalarGridSpec(
                    num_scalar_prefetch=0,
                    grid=(num_q,),
                    in_specs=[
                        pl.BlockSpec((block_q, d), lambda qi: (qi, 0)),      # Q tile
                        _block_spec((n, d), lambda qi: (0, 0), kv_buf_count),  # K resident
                        _block_spec((n, d), lambda qi: (0, 0), kv_buf_count),  # V resident
                    ],
                    out_specs=pl.BlockSpec((block_q, d), lambda qi: (qi, 0)),
                ),
                compiler_params=cparams,
            )(Qc, Kc, Vc)

        try:
            # Constant index_map -> one pipeline buffer is enough; halves K/V VMEM.
            return _call(1)
        except Exception:
            # pipeline_mode=pl.Buffered not supported by this jax/Mosaic: fall back to
            # the default double-buffered resident K/V (same result, 2x resident VMEM).
            return _call(None)

    # ---- Streaming path: kv grid axis is the reduction; K/V tiles pipelined from HBM.
    kernel = functools.partial(_streaming_kernel, recip_approx=recip_approx)
    cparams = pltpu.CompilerParams(
        dimension_semantics=("parallel", "arbitrary"),
        vmem_limit_bytes=vmem_limit_bytes)

    def _stream_call(kv_buf_count):
        return pl.pallas_call(
            kernel,
            out_shape=out_shape,
            grid_spec=pltpu.PrefetchScalarGridSpec(
                num_scalar_prefetch=0,
                grid=(num_q, num_kv),
                in_specs=[
                    pl.BlockSpec((block_q, d), lambda qi, ki: (qi, 0)),          # Q tile
                    _block_spec((block_kv, d), lambda qi, ki: (ki, 0), kv_buf_count),  # K
                    _block_spec((block_kv, d), lambda qi, ki: (ki, 0), kv_buf_count),  # V
                ],
                out_specs=pl.BlockSpec((block_q, d), lambda qi, ki: (qi, 0)),
                scratch_shapes=[
                    pltpu.VMEM((block_q, 1), jnp.float32),   # m_i (running max)
                    pltpu.VMEM((block_q, 1), jnp.float32),   # l_i (running denominator)
                    pltpu.VMEM((block_q, d), jnp.float32),   # O_i accumulator
                ],
            ),
            compiler_params=cparams,
        )(Qc, Kc, Vc)

    if streaming_buffer_count is not None:
        try:
            return _stream_call(streaming_buffer_count)
        except Exception:
            pass
    return _stream_call(None)


# --------------------------------------------------------------------------------------
# Reference + test
# --------------------------------------------------------------------------------------
def _reference(Q, K, V):
    # Plain-JAX f32 reference of the PyTorch module's math: softmax(Q K^T) V, no scaling.
    s = Q.astype(jnp.float32) @ K.astype(jnp.float32).T
    p = jax.nn.softmax(s, axis=-1)
    return p @ V.astype(jnp.float32)


if __name__ == "__main__":
    key = jax.random.PRNGKey(0)
    kq, kk, kv = jax.random.split(key, 3)

    # Small but tiling-friendly shapes: 2 q tiles (feeds both v7x TensorCores),
    # lane-dense d = 128.
    n, d = 256, 128
    scale = d ** -0.25  # keep logits O(1) so the numerics check is well conditioned
    Q = jax.random.normal(kq, (n, d), dtype=jnp.float32) * scale
    K = jax.random.normal(kk, (n, d), dtype=jnp.float32) * scale
    V = jax.random.normal(kv, (n, d), dtype=jnp.float32)

    ref = _reference(Q, K, V)

    # 1) Default config: bf16 MXU matmuls (f32 accumulation), resident K/V, in-kernel
    #    kv loop with a single kv step.
    out = jax.block_until_ready(flash_attention_v2(Q, K, V))
    assert out.shape == (n, d) and out.dtype == jnp.float32
    assert jnp.allclose(out, ref, atol=2e-2, rtol=2e-2), "bf16 resident kernel mismatch"

    # 2) Full-f32 matmuls, smaller kv block -> exercises the multi-step online-softmax
    #    loop on the resident path (and the exact-reciprocal epilogue).
    out_f32 = jax.block_until_ready(
        flash_attention_v2(Q, K, V, block_kv=128, matmul_dtype=jnp.float32))
    assert jnp.allclose(out_f32, ref, atol=1e-3, rtol=1e-3), "f32 resident kernel mismatch"

    # 3) Force the streaming (non-resident) K/V path.
    out_stream = jax.block_until_ready(
        flash_attention_v2(Q, K, V, block_kv=128, kv_resident_max_bytes=0))
    assert jnp.allclose(out_stream, ref, atol=2e-2, rtol=2e-2), "streaming kernel mismatch"

    print("KERNEL_OK")
</pallas_src>

<mosaic_0001>
module attributes {stable_mosaic.version = 11 : i64} {
  func.func @_resident_kernel(%arg0: i32, %arg1: memref<128x128xbf16, #tpu.memory_space<vmem>>, %arg2: memref<256x128xbf16, #tpu.memory_space<vmem>>, %arg3: memref<256x128xbf16, #tpu.memory_space<vmem>>, %arg4: memref<128x128xf32, #tpu.memory_space<vmem>>) attributes {dimension_semantics = [#tpu.dimension_semantics<parallel>], iteration_bounds = array<i64: 2>, scalar_prefetch = 0 : i64, scratch_operands = 0 : i64, tpu.core_type = #tpu.core_type<tc>, window_params = [{transform_indices = @transform_0, window_bounds = array<i64: 128, 128>}, {pipeline_mode = #tpu.pipeline_mode<synchronous>, transform_indices = @transform_1, window_bounds = array<i64: 256, 128>}, {pipeline_mode = #tpu.pipeline_mode<synchronous>, transform_indices = @transform_2, window_bounds = array<i64: 256, 128>}, {transform_indices = @transform_3, window_bounds = array<i64: 128, 128>}]} {
    %c0 = arith.constant 0 : index
    %c0_0 = arith.constant 0 : index
    %0 = vector.load %arg1[%c0, %c0_0] : memref<128x128xbf16, #tpu.memory_space<vmem>>, vector<128x128xbf16>
    %cst = arith.constant 0xFF800000 : f32
    %1 = vector.broadcast %cst : f32 to vector<128x1xf32>
    %cst_1 = arith.constant 0.000000e+00 : f32
    %2 = vector.broadcast %cst_1 : f32 to vector<128x1xf32>
    %cst_2 = arith.constant 0.000000e+00 : f32
    %3 = vector.broadcast %cst_2 : f32 to vector<128x128xf32>
    %c0_i32 = arith.constant 0 : i32
    %c256_i32 = arith.constant 256 : i32
    %4 = arith.muli %c0_i32, %c256_i32 : i32
    %5 = tpu.assume_multiple %4, 256 : i32
    %6 = arith.index_cast %5 : i32 to index
    %c0_3 = arith.constant 0 : index
    %7 = vector.load %arg2[%6, %c0_3] : memref<256x128xbf16, #tpu.memory_space<vmem>>, vector<256x128xbf16>
    %8 = arith.index_cast %5 : i32 to index
    %c0_4 = arith.constant 0 : index
    %9 = vector.load %arg3[%8, %c0_4] : memref<256x128xbf16, #tpu.memory_space<vmem>>, vector<256x128xbf16>
    %cst_5 = arith.constant dense<0.000000e+00> : vector<128x256xf32>
    %10 = tpu.matmul %0, %7, %cst_5 {dimension_numbers = #tpu.dot_dimension_numbers<[1], [1], [0], [0], [0, 0, 1, 0], [], []>} : vector<128x128xbf16>, vector<256x128xbf16>, vector<128x256xf32> -> vector<128x256xf32>
    %cst_6 = arith.constant dense<0xFF800000> : vector<128xf32>
    %11 = vector.multi_reduction <maximumf>, %10, %cst_6 [1] : vector<128x256xf32> to vector<128xf32>
    %12 = vector.shape_cast %11 : vector<128xf32> to vector<128x1xf32>
    %13 = arith.maximumf %1, %12 : vector<128x1xf32>
    %14 = arith.subf %1, %13 : vector<128x1xf32>
    %15 = math.exp %14 : vector<128x1xf32>
    %16 = vector.broadcast %13 : vector<128x1xf32> to vector<128x256xf32>
    %17 = arith.subf %10, %16 : vector<128x256xf32>
    %18 = math.exp %17 : vector<128x256xf32>
    %19 = arith.mulf %15, %2 : vector<128x1xf32>
    %cst_7 = arith.constant dense<0.000000e+00> : vector<128xf32>
    %20 = vector.multi_reduction <add>, %18, %cst_7 [1] : vector<128x256xf32> to vector<128xf32>
    %21 = vector.shape_cast %20 : vector<128xf32> to vector<128x1xf32>
    %22 = arith.addf %19, %21 : vector<128x1xf32>
    %23 = vector.broadcast %15 : vector<128x1xf32> to vector<128x128xf32>
    %24 = arith.mulf %23, %3 : vector<128x128xf32>
    %25 = arith.truncf %18 : vector<128x256xf32> to vector<128x256xbf16>
    %cst_8 = arith.constant dense<0.000000e+00> : vector<128x128xf32>
    %26 = tpu.matmul %25, %9, %cst_8 {dimension_numbers = #tpu.dot_dimension_numbers<[1], [0], [0], [1], [0, 0, 1, 1], [], []>} : vector<128x256xbf16>, vector<256x128xbf16>, vector<128x128xf32> -> vector<128x128xf32>
    %27 = arith.addf %24, %26 : vector<128x128xf32>
    %c1_i32 = arith.constant 1 : i32
    %28 = tpu.reciprocal %22 {approx = true} : vector<128x1xf32> -> vector<128x1xf32>
    %29 = vector.broadcast %28 : vector<128x1xf32> to vector<128x128xf32>
    %30 = arith.mulf %27, %29 : vector<128x128xf32>
    %c0_9 = arith.constant 0 : index
    %c0_10 = arith.constant 0 : index
    %31 = vector.load %arg4[%c0_9, %c0_10] : memref<128x128xf32, #tpu.memory_space<vmem>>, vector<128x128xf32>
    tpu.vector_store %arg4[%c0_9, %c0_10], %30 {strides = array<i32>} : memref<128x128xf32, #tpu.memory_space<vmem>>, vector<128x128xf32>,
    return
  }
  func.func @transform_0(%arg0: i32) -> (i32, i32) {
    %c0_i32 = arith.constant 0 : i32
    %c0_i32_0 = arith.constant 0 : i32
    return %arg0, %c0_i32 : i32, i32
  }
  func.func @transform_1(%arg0: i32) -> (i32, i32) {
    %c0_i32 = arith.constant 0 : i32
    %c0_i32_0 = arith.constant 0 : i32
    %c0_i32_1 = arith.constant 0 : i32
    return %c0_i32, %c0_i32_0 : i32, i32
  }
  func.func @transform_2(%arg0: i32) -> (i32, i32) {
    %c0_i32 = arith.constant 0 : i32
    %c0_i32_0 = arith.constant 0 : i32
    %c0_i32_1 = arith.constant 0 : i32
    return %c0_i32, %c0_i32_0 : i32, i32
  }
  func.func @transform_3(%arg0: i32) -> (i32, i32) {
    %c0_i32 = arith.constant 0 : i32
    %c0_i32_0 = arith.constant 0 : i32
    return %arg0, %c0_i32 : i32, i32
  }
}

module attributes {stable_mosaic.version = 11 : i64} {
  func.func @_resident_kernel(%arg0: i32, %arg1: memref<128x128xbf16, #tpu.memory_space<vmem>>, %arg2: memref<256x128xbf16, #tpu.memory_space<vmem>>, %arg3: memref<256x128xbf16, #tpu.memory_space<vmem>>, %arg4: memref<128x128xf32, #tpu.memory_space<vmem>>) attributes {dimension_semantics = [#tpu.dimension_semantics<parallel>], iteration_bounds = array<i64: 2>, scalar_prefetch = 0 : i64, scratch_operands = 0 : i64, tpu.core_type = #tpu.core_type<tc>, window_params = [{transform_indices = @transform_0, window_bounds = array<i64: 128, 128>}, {pipeline_mode = #tpu.pipeline_mode<synchronous>, transform_indices = @transform_1, window_bounds = array<i64: 256, 128>}, {pipeline_mode = #tpu.pipeline_mode<synchronous>, transform_indices = @transform_2, window_bounds = array<i64: 256, 128>}, {transform_indices = @transform_3, window_bounds = array<i64: 128, 128>}]} {
    %c0 = arith.constant 0 : index
    %c0_0 = arith.constant 0 : index
    %0 = vector.load %arg1[%c0, %c0_0] : memref<128x128xbf16, #tpu.memory_space<vmem>>, vector<128x128xbf16>
    %cst = arith.constant 0xFF800000 : f32
    %1 = vector.broadcast %cst : f32 to vector<128x1xf32>
    %cst_1 = arith.constant 0.000000e+00 : f32
    %2 = vector.broadcast %cst_1 : f32 to vector<128x1xf32>
    %cst_2 = arith.constant 0.000000e+00 : f32
    %3 = vector.broadcast %cst_2 : f32 to vector<128x128xf32>
    %c0_i32 = arith.constant 0 : i32
    %c256_i32 = arith.constant 256 : i32
    %4 = arith.muli %c0_i32, %c256_i32 : i32
    %5 = tpu.assume_multiple %4, 256 : i32
    %6 = arith.index_cast %5 : i32 to index
    %c0_3 = arith.constant 0 : index
    %7 = vector.load %arg2[%6, %c0_3] : memref<256x128xbf16, #tpu.memory_space<vmem>>, vector<256x128xbf16>
    %8 = arith.index_cast %5 : i32 to index
    %c0_4 = arith.constant 0 : index
    %9 = vector.load %arg3[%8, %c0_4] : memref<256x128xbf16, #tpu.memory_space<vmem>>, vector<256x128xbf16>
    %cst_5 = arith.constant dense<0.000000e+00> : vector<128x256xf32>
    %10 = tpu.matmul %0, %7, %cst_5 {dimension_numbers = #tpu.dot_dimension_numbers<[1], [1], [0], [0], [0, 0, 1, 0], [], []>} : vector<128x128xbf16>, vector<256x128xbf16>, vector<128x256xf32> -> vector<128x256xf32>
    %cst_6 = arith.constant dense<0xFF800000> : vector<128xf32>
    %11 = vector.multi_reduction <maximumf>, %10, %cst_6 [1] : vector<128x256xf32> to vector<128xf32>
    %12 = vector.shape_cast %11 : vector<128xf32> to vector<128x1xf32>
    %13 = arith.maximumf %1, %12 : vector<128x1xf32>
    %14 = arith.subf %1, %13 : vector<128x1xf32>
    %15 = math.exp %14 : vector<128x1xf32>
    %16 = vector.broadcast %13 : vector<128x1xf32> to vector<128x256xf32>
    %17 = arith.subf %10, %16 : vector<128x256xf32>
    %18 = math.exp %17 : vector<128x256xf32>
    %19 = arith.mulf %15, %2 : vector<128x1xf32>
    %cst_7 = arith.constant dense<0.000000e+00> : vector<128xf32>
    %20 = vector.multi_reduction <add>, %18, %cst_7 [1] : vector<128x256xf32> to vector<128xf32>
    %21 = vector.shape_cast %20 : vector<128xf32> to vector<128x1xf32>
    %22 = arith.addf %19, %21 : vector<128x1xf32>
    %23 = vector.broadcast %15 : vector<128x1xf32> to vector<128x128xf32>
    %24 = arith.mulf %23, %3 : vector<128x128xf32>
    %25 = arith.truncf %18 : vector<128x256xf32> to vector<128x256xbf16>
    %cst_8 = arith.constant dense<0.000000e+00> : vector<128x128xf32>
    %26 = tpu.matmul %25, %9, %cst_8 {dimension_numbers = #tpu.dot_dimension_numbers<[1], [0], [0], [1], [0, 0, 1, 1], [], []>} : vector<128x256xbf16>, vector<256x128xbf16>, vector<128x128xf32> -> vector<128x128xf32>
    %27 = arith.addf %24, %26 : vector<128x128xf32>
    %c1_i32 = arith.constant 1 : i32
    %28 = tpu.reciprocal %22 {approx = true} : vector<128x1xf32> -> vector<128x1xf32>
    %29 = vector.broadcast %28 : vector<128x1xf32> to vector<128x128xf32>
    %30 = arith.mulf %27, %29 : vector<128x128xf32>
    %c0_9 = arith.constant 0 : index
    %c0_10 = arith.constant 0 : index
    %31 = vector.load %arg4[%c0_9, %c0_10] : memref<128x128xf32, #tpu.memory_space<vmem>>, vector<128x128xf32>
    tpu.vector_store %arg4[%c0_9, %c0_10], %30 {strides = array<i32>} : memref<128x128xf32, #tpu.memory_space<vmem>>, vector<128x128xf32>,
    return
  }
  func.func @transform_0(%arg0: i32) -> (i32, i32) {
    %c0_i32 = arith.constant 0 : i32
    %c0_i32_0 = arith.constant 0 : i32
    return %arg0, %c0_i32 : i32, i32
  }
  func.func @transform_1(%arg0: i32) -> (i32, i32) {
    %c0_i32 = arith.constant 0 : i32
    %c0_i32_0 = arith.constant 0 : i32
    %c0_i32_1 = arith.constant 0 : i32
    return %c0_i32, %c0_i32_0 : i32, i32
  }
  func.func @transform_2(%arg0: i32) -> (i32, i32) {
    %c0_i32 = arith.constant 0 : i32
    %c0_i32_0 = arith.constant 0 : i32
    %c0_i32_1 = arith.constant 0 : i32
    return %c0_i32, %c0_i32_0 : i32, i32
  }
  func.func @transform_3(%arg0: i32) -> (i32, i32) {
    %c0_i32 = arith.constant 0 : i32
    %c0_i32_0 = arith.constant 0 : i32
    return %arg0, %c0_i32 : i32, i32
  }
}

</mosaic_0001>

<llo_original>
// kernel: tpu_custom_call.1
$region0: #{tpu_custom_call.1}
  #allocation0 [shape = 'u32[]', space=smem, size = 0x4, offset = 0x4, fixed_abs, tag = 'smem constant byte address 0x4 - core index']
  #allocation1 [shape = 'u32[144,128]{1,0:T(1,128)}', space=vmem, size = 0x12000, scoped, tag = 'internal scratch']
  %s0 = inlined_call_operand.hbm [shape: bf16[256,128], index: 0, kind: input, shape index: {}]
  %s1 = inlined_call_operand.hbm [shape: bf16[256,128], index: 1, kind: input, shape index: {}]
  %s2 = inlined_call_operand.hbm [shape: bf16[256,128], index: 2, kind: input, shape index: {}]
  %s3 = inlined_call_operand.hbm [shape: f32[256,128], index: 3, kind: output, shape index: {}]
  %s4 = sld [smem:[#allocation0]]
  $region57: #{tpu_custom_call.1} parent=0
    _
  %s6 = ssub.s32 1, %s4
  %s7 = scalar_select 0, %s6, %s4
  $region1: #{tpu_custom_call.1} parent=0
    #allocation2 [shape = 'u8[65536]{0}', space=vmem, size = 0x10000, scoped, tag = 'input window, operand 0']
    #allocation3 [shape = 's32[2]{0}', space=sflag, size = 0x8, scoped, tag = 'scoped memory for tpu_custom_call.1']
    #allocation4 [shape = 's32[2]{0}', space=sflag, size = 0x8, scoped, tag = 'scoped memory for tpu_custom_call.1']
    #allocation5 [shape = 'u8[65536]{0}', space=vmem, size = 0x10000, scoped, tag = 'input window, operand 1, single buffered']
    #allocation6 [shape = 's32[1]{0}', space=sflag, size = 0x4, scoped, tag = 'scoped memory for tpu_custom_call.1']
    #allocation7 [shape = 'u8[65536]{0}', space=vmem, size = 0x10000, scoped, tag = 'input window, operand 2, single buffered']
    #allocation8 [shape = 'u8[131072]{0}', space=vmem, size = 0x20000, scoped, tag = 'output window, operand 0']
    %8 = vsyncpa [#allocation3], 0
    %s9 = scalar_lea.sflag [#allocation3], 1
    %10 = vsyncpa %s9, 0
    %11 = vsyncpa [#allocation6], 0
    %12 = vsyncpa [#allocation4], 0
    %s13 = scalar_lea.sflag [#allocation4], 1
    %14 = vsyncpa %s13, 0
    loop: start=0, step=1, limit=4
    $region2: #{tpu_custom_call.1} parent=1 // loop_pre_header
      _
    $region3: #{tpu_custom_call.1} parent=1 // loop_header
      %s16 = sphi 0, %s20
      %p17 = scmp.ge.s32.totalorder %s16, 4
      %s26 = sphi 0, %s28
      %s29 = sphi 0, %s26
      %s30 = sphi 0, %s29
      %s46 = sphi 0, %s30
      %s50 = sphi 0, %s50
      %s52 = sphi 0, %s50
      %s53 = sphi 0, %s52
      %s67 = sphi 0, %s53
      %s71 = sphi 0, %s71
      %s73 = sphi 0, %s71
      %s74 = sphi 0, %s73
      %s88 = sphi 0, %s74
      %s94 = sphi 0, %s96
      %s97 = sphi 0, %s94
      %s98 = sphi 0, %s97
      %s114 = sphi 0, %s98
    $region4: #{tpu_custom_call.1} parent=1 // loop_header_branch
      %19 = sbr.rel (%p17) target = $region8
    $region5: #{tpu_custom_call.1} parent=1 // loop_body
      %s21 = ssub.s32 %s16, 1
      %s22 = ssub.s32 %s16, 2
      %s23 = sadd.s32 %s16, 1
      %s24 = ssub.s32 %s16, %s23
      %p25 = scmp.eq.s32.totalorder %s24, 0
      %s27 = sadd.s32 %s26, 1
      %s28 = scalar_select %p25, %s26, %s27
      %p31 = pneg %p25
      %p32 = scmp.eq.s32.totalorder %s16, 1
      %p33 = por %p31, %p32
      %p34 = scmp.ne.s32.totalorder %s26, %s29
      %p35 = scmp.eq.s32.totalorder %s16, 0
      %p36 = por %p34, %p35
      %p37 = scmp.ne.s32.totalorder %s26, %s29
      %p38 = scmp.eq.s32.totalorder %s21, 1
      %p39 = por %p37, %p38
      %p40 = scmp.ne.s32.totalorder %s29, %s30
      %p41 = scmp.eq.s32.totalorder %s21, 0
      %p42 = por %p40, %p41
      %p43 = scmp.ne.s32.totalorder %s29, %s30
      %p44 = scmp.eq.s32.totalorder %s22, 1
      %p45 = por %p43, %p44
      %p47 = scmp.ne.s32.totalorder %s30, %s46
      %p48 = scmp.eq.s32.totalorder %s22, 0
      %p49 = por %p47, %p48
      %s51 = sadd.s32 %s50, 1
      %p54 = scmp.eq.s32.totalorder %s16, 1
      %p55 = scmp.ne.s32.totalorder %s50, %s52
      %p56 = scmp.eq.s32.totalorder %s16, 0
      %p57 = por %p55, %p56
      %p58 = scmp.ne.s32.totalorder %s50, %s52
      %p59 = scmp.eq.s32.totalorder %s21, 1
      %p60 = por %p58, %p59
      %p61 = scmp.ne.s32.totalorder %s52, %s53
      %p62 = scmp.eq.s32.totalorder %s21, 0
      %p63 = por %p61, %p62
      %p64 = scmp.ne.s32.totalorder %s52, %s53
      %p65 = scmp.eq.s32.totalorder %s22, 1
      %p66 = por %p64, %p65
      %p68 = scmp.ne.s32.totalorder %s53, %s67
      %p69 = scmp.eq.s32.totalorder %s22, 0
      %p70 = por %p68, %p69
      %s72 = sadd.s32 %s71, 1
      %p75 = scmp.eq.s32.totalorder %s16, 1
      %p76 = scmp.ne.s32.totalorder %s71, %s73
      %p77 = scmp.eq.s32.totalorder %s16, 0
      %p78 = por %p76, %p77
      %p79 = scmp.ne.s32.totalorder %s71, %s73
      %p80 = scmp.eq.s32.totalorder %s21, 1
      %p81 = por %p79, %p80
      %p82 = scmp.ne.s32.totalorder %s73, %s74
      %p83 = scmp.eq.s32.totalorder %s21, 0
      %p84 = por %p82, %p83
      %p85 = scmp.ne.s32.totalorder %s73, %s74
      %p86 = scmp.eq.s32.totalorder %s22, 1
      %p87 = por %p85, %p86
      %p89 = scmp.ne.s32.totalorder %s74, %s88
      %p90 = scmp.eq.s32.totalorder %s22, 0
      %p91 = por %p89, %p90
      %s92 = ssub.s32 %s16, %s23
      %p93 = scmp.eq.s32.totalorder %s92, 0
      %s95 = sadd.s32 %s94, 1
      %s96 = scalar_select %p93, %s94, %s95
      %p99 = pneg %p93
      %p100 = scmp.eq.s32.totalorder %s16, 1
      %p101 = por %p99, %p100
      %p102 = scmp.ne.s32.totalorder %s94, %s97
      %p103 = scmp.eq.s32.totalorder %s16, 0
      %p104 = por %p102, %p103
      %p105 = scmp.ne.s32.totalorder %s94, %s97
      %p106 = scmp.eq.s32.totalorder %s21, 1
      %p107 = por %p105, %p106
      %p108 = scmp.ne.s32.totalorder %s97, %s98
      %p109 = scmp.eq.s32.totalorder %s21, 0
      %p110 = por %p108, %p109
      %p111 = scmp.ne.s32.totalorder %s97, %s98
      %p112 = scmp.eq.s32.totalorder %s22, 1
      %p113 = por %p111, %p112
      %p115 = scmp.ne.s32.totalorder %s98, %s114
      %p116 = scmp.eq.s32.totalorder %s22, 0
      %p117 = por %p115, %p116
      %p118 = scmp.le.s32.totalorder 1, %s16
      %p119 = scmp.lt.s32.totalorder %s16, 3
      %p120 = pnand %p118, %p119
      %p121 = pneg %p120
      // Predicated region
      $region9: #{tpu_custom_call.1} parent=5 // pred_check
        _
      $region10: #{tpu_custom_call.1} parent=5 // pred_check_branch
        %123 = sbr.rel (%p120) target = $region12
      $region11: #{tpu_custom_call.1} parent=5 // pred_region
        %s124 = ssub.s32 %s16, 1
        // Predicated region
        $region13: #{tpu_custom_call.1} parent=11 // pred_check
          %p125 = pneg %p63
        $region14: #{tpu_custom_call.1} parent=11 // pred_check_branch
          %127 = sbr.rel (%p125) target = $region16
        $region15: #{tpu_custom_call.1} parent=11 // pred_region
          %s129 = ssub.s32 2048, 2048
          %130 = vsyncadd [#allocation6], %s129
          %s131 = sshll.u32 [#allocation5], 4
          %s132 = int_to_ptr.vmem [resolvable:$true] %s131
          %137 = dma.hbm_to_vmem [thread:$0]  %s1, 2048, %s132, [#allocation6], 64, 64, 4
        $region16: #{tpu_custom_call.1} parent=11 // pred_fallthru
          _
        // Predicated region
        $region17: #{tpu_custom_call.1} parent=11 // pred_check
          %p138 = pneg %p84
        $region18: #{tpu_custom_call.1} parent=11 // pred_check_branch
          %140 = sbr.rel (%p138) target = $region20
        $region19: #{tpu_custom_call.1} parent=11 // pred_region
          %s142 = ssub.s32 2048, 2048
          %143 = vsyncadd [#allocation6], %s142
          %s144 = sshll.u32 [#allocation7], 4
          %s145 = int_to_ptr.vmem [resolvable:$true] %s144
          %150 = dma.hbm_to_vmem [thread:$0]  %s2, 2048, %s145, [#allocation6], 64, 64, 4
        $region20: #{tpu_custom_call.1} parent=11 // pred_fallthru
          _
      $region12: #{tpu_custom_call.1} parent=5 // pred_fallthru
        _
      %p151 = scmp.lt.s32.totalorder %s16, 2
      // Predicated region
      $region21: #{tpu_custom_call.1} parent=5 // pred_check
        %p152 = pneg %p151
      $region22: #{tpu_custom_call.1} parent=5 // pred_check_branch
        %154 = sbr.rel (%p152) target = $region24
      $region23: #{tpu_custom_call.1} parent=5 // pred_region
        // Predicated region
        $region25: #{tpu_custom_call.1} parent=23 // pred_check
          %p155 = pneg %p36
        $region26: #{tpu_custom_call.1} parent=23 // pred_check_branch
          %157 = sbr.rel (%p155) target = $region28
        $region27: #{tpu_custom_call.1} parent=23 // pred_region
          %s158 = sand.u32 %s26, 1
          %s159 = scalar_lea.sflag [#allocation3], %s158
          %s160 = sand.u32 %s26, 1
          %s161 = smul.addr %s160, 64
          %s162 = scalar_lea.vmem [#allocation2], %s161
          %s163 = smul.u32 16, %s16
          %s165 = ssub.s32 1024, 1024
          %166 = vsyncadd %s159, %s165
          %s167 = smul.addr %s163, 64
          %s168 = scalar_lea.hbm %s0, %s167
          %s169 = sshll.u32 %s162, 4
          %s170 = int_to_ptr.vmem [resolvable:$true] %s169
          %175 = dma.hbm_to_vmem [thread:$0]  %s168, 1024, %s170, %s159, 64, 64, 4
        $region28: #{tpu_custom_call.1} parent=23 // pred_fallthru
          _
      $region24: #{tpu_custom_call.1} parent=5 // pred_fallthru
        _
      %p176 = scmp.le.s32.totalorder 1, %s16
      %p177 = scmp.lt.s32.totalorder %s16, 3
      %p178 = pnand %p176, %p177
      %p179 = pneg %p178
      // Predicated region
      $region29: #{tpu_custom_call.1} parent=5 // pred_check
        _
      $region30: #{tpu_custom_call.1} parent=5 // pred_check_branch
        %181 = sbr.rel (%p178) target = $region32
      $region31: #{tpu_custom_call.1} parent=5 // pred_region
        %s182 = ssub.s32 %s16, 1
        %s183 = sand.u32 %s29, 1
        %s184 = scalar_lea.sflag [#allocation3], %s183
        %s185 = sand.u32 %s29, 1
        %s186 = smul.addr %s185, 64
        %s187 = scalar_lea.vmem [#allocation2], %s186
        // Predicated region
        $region33: #{tpu_custom_call.1} parent=31 // pred_check
          %p188 = pneg %p42
        $region34: #{tpu_custom_call.1} parent=31 // pred_check_branch
          %190 = sbr.rel (%p188) target = $region36
        $region35: #{tpu_custom_call.1} parent=31 // pred_region
          %191 = dma.done %s184, 1024
        $region36: #{tpu_custom_call.1} parent=31 // pred_fallthru
          _
        // Predicated region
        $region37: #{tpu_custom_call.1} parent=31 // pred_check
          %p192 = pneg %p63
        $region38: #{tpu_custom_call.1} parent=31 // pred_check_branch
          %194 = sbr.rel (%p192) target = $region40
        $region39: #{tpu_custom_call.1} parent=31 // pred_region
          %195 = dma.done [#allocation6], 2048
        $region40: #{tpu_custom_call.1} parent=31 // pred_fallthru
          _
        // Predicated region
        $region41: #{tpu_custom_call.1} parent=31 // pred_check
          %p196 = pneg %p84
        $region42: #{tpu_custom_call.1} parent=31 // pred_check_branch
          %198 = sbr.rel (%p196) target = $region44
        $region43: #{tpu_custom_call.1} parent=31 // pred_region
          %199 = dma.done [#allocation6], 2048
        $region44: #{tpu_custom_call.1} parent=31 // pred_fallthru
          _
        %s200 = sand.u32 %s29, 1
        %s201 = scalar_lea.sflag [#allocation3], %s200
        %s202 = sand.u32 %s29, 1
        %s203 = smul.addr %s202, 64
        %s204 = scalar_lea.vmem [#allocation2], %s203
        %p205 = pneg %p42
        %p206 = pneg %p39
        %p207 = pneg %p63
        %p208 = pneg %p60
        %p209 = pneg %p84
        %p210 = pneg %p81
        %p211 = pneg %p110
        %p212 = pneg %p107
        %s213 = sand.u32 %s97, 1
        %s214 = scalar_lea.sflag [#allocation4], %s213
        %s215 = sand.u32 %s97, 1
        %s216 = smul.addr %s215, 128
        %s217 = scalar_lea.vmem [#allocation8], %s216
        %s218 = smul.u32 16, %s21
        %s219 = smul.u32 16, %s21
        %v221 = vld [vmem:[%s187] sm:$0xf]
        %v222 = vld [vmem:[%s187 + $0x4] sm:$0xf]
        %v223 = vld [vmem:[%s187 + $0x8] sm:$0xf]
        %v224 = vld [vmem:[%s187 + $0xc] sm:$0xf]
        %v225 = vld [vmem:[%s187 + $0x10] sm:$0xf]
        %v226 = vld [vmem:[%s187 + $0x14] sm:$0xf]
        %v227 = vld [vmem:[%s187 + $0x18] sm:$0xf]
        %v228 = vld [vmem:[%s187 + $0x1c] sm:$0xf]
        %v229 = vld [vmem:[%s187 + $0x20] sm:$0xf]
        %v230 = vld [vmem:[%s187 + $0x24] sm:$0xf]
        %v231 = vld [vmem:[%s187 + $0x28] sm:$0xf]
        %v232 = vld [vmem:[%s187 + $0x2c] sm:$0xf]
        %v233 = vld [vmem:[%s187 + $0x30] sm:$0xf]
        %v234 = vld [vmem:[%s187 + $0x34] sm:$0xf]
        %v235 = vld [vmem:[%s187 + $0x38] sm:$0xf]
        %v236 = vld [vmem:[%s187 + $0x3c] sm:$0xf]
        %v237 = vld [vmem:[#allocation5] sm:$0xf]
        %v238 = vld [vmem:[#allocation5 + $0x4] sm:$0xf]
        %v239 = vld [vmem:[#allocation5 + $0x8] sm:$0xf]
        %v240 = vld [vmem:[#allocation5 + $0xc] sm:$0xf]
        %v241 = vld [vmem:[#allocation5 + $0x10] sm:$0xf]
        %v242 = vld [vmem:[#allocation5 + $0x14] sm:$0xf]
        %v243 = vld [vmem:[#allocation5 + $0x18] sm:$0xf]
        %v244 = vld [vmem:[#allocation5 + $0x1c] sm:$0xf]
        %v245 = vld [vmem:[#allocation5 + $0x20] sm:$0xf]
        %v246 = vld [vmem:[#allocation5 + $0x24] sm:$0xf]
        %v247 = vld [vmem:[#allocation5 + $0x28] sm:$0xf]
        %v248 = vld [vmem:[#allocation5 + $0x2c] sm:$0xf]
        %v249 = vld [vmem:[#allocation5 + $0x30] sm:$0xf]
        %v250 = vld [vmem:[#allocation5 + $0x34] sm:$0xf]
        %v251 = vld [vmem:[#allocation5 + $0x38] sm:$0xf]
        %v252 = vld [vmem:[#allocation5 + $0x3c] sm:$0xf]
        %v253 = vld [vmem:[#allocation5 + $0x40] sm:$0xf]
        %v254 = vld [vmem:[#allocation5 + $0x44] sm:$0xf]
        %v255 = vld [vmem:[#allocation5 + $0x48] sm:$0xf]
        %v256 = vld [vmem:[#allocation5 + $0x4c] sm:$0xf]
        %v257 = vld [vmem:[#allocation5 + $0x50] sm:$0xf]
        %v258 = vld [vmem:[#allocation5 + $0x54] sm:$0xf]
        %v259 = vld [vmem:[#allocation5 + $0x58] sm:$0xf]
        %v260 = vld [vmem:[#allocation5 + $0x5c] sm:$0xf]
        %v261 = vld [vmem:[#allocation5 + $0x60] sm:$0xf]
        %v262 = vld [vmem:[#allocation5 + $0x64] sm:$0xf]
        %v263 = vld [vmem:[#allocation5 + $0x68] sm:$0xf]
        %v264 = vld [vmem:[#allocation5 + $0x6c] sm:$0xf]
        %v265 = vld [vmem:[#allocation5 + $0x70] sm:$0xf]
        %v266 = vld [vmem:[#allocation5 + $0x74] sm:$0xf]
        %v267 = vld [vmem:[#allocation5 + $0x78] sm:$0xf]
        %v268 = vld [vmem:[#allocation5 + $0x7c] sm:$0xf]
        %v269 = vld [vmem:[#allocation7] sm:$0xf]
        %v270 = vld [vmem:[#allocation7 + $0x4] sm:$0xf]
        %v271 = vld [vmem:[#allocation7 + $0x8] sm:$0xf]
        %v272 = vld [vmem:[#allocation7 + $0xc] sm:$0xf]
        %v273 = vld [vmem:[#allocation7 + $0x10] sm:$0xf]
        %v274 = vld [vmem:[#allocation7 + $0x14] sm:$0xf]
        %v275 = vld [vmem:[#allocation7 + $0x18] sm:$0xf]
        %v276 = vld [vmem:[#allocation7 + $0x1c] sm:$0xf]
        %v277 = vld [vmem:[#allocation7 + $0x20] sm:$0xf]
        %v278 = vld [vmem:[#allocation7 + $0x24] sm:$0xf]
        %v279 = vld [vmem:[#allocation7 + $0x28] sm:$0xf]
        %v280 = vld [vmem:[#allocation7 + $0x2c] sm:$0xf]
        %v281 = vld [vmem:[#allocation7 + $0x30] sm:$0xf]
        %v282 = vld [vmem:[#allocation7 + $0x34] sm:$0xf]
        %v283 = vld [vmem:[#allocation7 + $0x38] sm:$0xf]
        %v284 = vld [vmem:[#allocation7 + $0x3c] sm:$0xf]
        %v285 = vld [vmem:[#allocation7 + $0x40] sm:$0xf]
        %v286 = vld [vmem:[#allocation7 + $0x44] sm:$0xf]
        %v287 = vld [vmem:[#allocation7 + $0x48] sm:$0xf]
        %v288 = vld [vmem:[#allocation7 + $0x4c] sm:$0xf]
        %v289 = vld [vmem:[#allocation7 + $0x50] sm:$0xf]
        %v290 = vld [vmem:[#allocation7 + $0x54] sm:$0xf]
        %v291 = vld [vmem:[#allocation7 + $0x58] sm:$0xf]
        %v292 = vld [vmem:[#allocation7 + $0x5c] sm:$0xf]
        %v293 = vld [vmem:[#allocation7 + $0x60] sm:$0xf]
        %v294 = vld [vmem:[#allocation7 + $0x64] sm:$0xf]
        %v295 = vld [vmem:[#allocation7 + $0x68] sm:$0xf]
        %v296 = vld [vmem:[#allocation7 + $0x6c] sm:$0xf]
        %v297 = vld [vmem:[#allocation7 + $0x70] sm:$0xf]
        %v298 = vld [vmem:[#allocation7 + $0x74] sm:$0xf]
        %v299 = vld [vmem:[#allocation7 + $0x78] sm:$0xf]
        %v300 = vld [vmem:[#allocation7 + $0x7c] sm:$0xf]
        %v317 = vunpack.c.l.b16 %v221
        %v318 = vunpack.c.l.b16 %v222
        %v319 = vunpack.c.l.b16 %v223
        %v320 = vunpack.c.l.b16 %v224
        %v321 = vunpack.c.l.b16 %v225
        %v322 = vunpack.c.l.b16 %v226
        %v323 = vunpack.c.l.b16 %v227
        %v324 = vunpack.c.l.b16 %v228
        %v325 = vunpack.c.l.b16 %v229
        %v326 = vunpack.c.l.b16 %v230
        %v327 = vunpack.c.l.b16 %v231
        %v328 = vunpack.c.l.b16 %v232
        %v329 = vunpack.c.l.b16 %v233
        %v330 = vunpack.c.l.b16 %v234
        %v331 = vunpack.c.l.b16 %v235
        %v332 = vunpack.c.l.b16 %v236
        %v333 = vpack.c.b16 %v318, %v317
        %v334 = vpack.c.b16 %v320, %v319
        %v335 = vpack.c.b16 %v322, %v321
        %v336 = vpack.c.b16 %v324, %v323
        %v337 = vpack.c.b16 %v326, %v325
        %v338 = vpack.c.b16 %v328, %v327
        %v339 = vpack.c.b16 %v330, %v329
        %v340 = vpack.c.b16 %v332, %v331
        %v381 = vunpack.c.l.b16 %v237
        %v382 = vunpack.c.l.b16 %v238
        %v383 = vunpack.c.l.b16 %v239
        %v384 = vunpack.c.l.b16 %v240
        %v385 = vunpack.c.l.b16 %v241
        %v386 = vunpack.c.l.b16 %v242
        %v387 = vunpack.c.l.b16 %v243
        %v388 = vunpack.c.l.b16 %v244
        %v389 = vunpack.c.l.b16 %v245
        %v390 = vunpack.c.l.b16 %v246
        %v391 = vunpack.c.l.b16 %v247
        %v392 = vunpack.c.l.b16 %v248
        %v393 = vunpack.c.l.b16 %v249
        %v394 = vunpack.c.l.b16 %v250
        %v395 = vunpack.c.l.b16 %v251
        %v396 = vunpack.c.l.b16 %v252
        %v397 = vunpack.c.l.b16 %v253
        %v398 = vunpack.c.l.b16 %v254
        %v399 = vunpack.c.l.b16 %v255
        %v400 = vunpack.c.l.b16 %v256
        %v401 = vunpack.c.l.b16 %v257
        %v402 = vunpack.c.l.b16 %v258
        %v403 = vunpack.c.l.b16 %v259
        %v404 = vunpack.c.l.b16 %v260
        %v405 = vunpack.c.l.b16 %v261
        %v406 = vunpack.c.l.b16 %v262
        %v407 = vunpack.c.l.b16 %v263
        %v408 = vunpack.c.l.b16 %v264
        %v409 = vunpack.c.l.b16 %v265
        %v410 = vunpack.c.l.b16 %v266
        %v411 = vunpack.c.l.b16 %v267
        %v412 = vunpack.c.l.b16 %v268
        %v413 = vpack.c.b16 %v382, %v381
        %v414 = vpack.c.b16 %v384, %v383
        %v415 = vpack.c.b16 %v386, %v385
        %v416 = vpack.c.b16 %v388, %v387
        %v417 = vpack.c.b16 %v390, %v389
        %v418 = vpack.c.b16 %v392, %v391
        %v419 = vpack.c.b16 %v394, %v393
        %v420 = vpack.c.b16 %v396, %v395
        %v421 = vpack.c.b16 %v398, %v397
        %v422 = vpack.c.b16 %v400, %v399
        %v423 = vpack.c.b16 %v402, %v401
        %v424 = vpack.c.b16 %v404, %v403
        %v425 = vpack.c.b16 %v406, %v405
        %v426 = vpack.c.b16 %v408, %v407
        %v427 = vpack.c.b16 %v410, %v409
        %v428 = vpack.c.b16 %v412, %v411
        %445 = vmatprep.subr.bf16.mxu0 0
        %446 = vmatpush1.bf16.xpose.msra.mxu0 %v420
        %447 = vmatprep.subr.bf16.mxu0 0
        %448 = vmatpush1.bf16.xpose.msra.mxu0 %v419
        %449 = vmatprep.subr.bf16.mxu0 0
        %450 = vmatpush1.bf16.xpose.msra.mxu0 %v418
        %451 = vmatprep.subr.bf16.mxu0 0
        %452 = vmatpush1.bf16.xpose.msra.mxu0 %v417
        %453 = vmatprep.subr.bf16.mxu0 0
        %454 = vmatpush1.bf16.xpose.msra.mxu0 %v416
        %455 = vmatprep.subr.bf16.mxu0 0
        %456 = vmatpush1.bf16.xpose.msra.mxu0 %v415
        %457 = vmatprep.subr.bf16.mxu0 0
        %458 = vmatpush1.bf16.xpose.msra.mxu0 %v414
        %459 = vmatprep.subr.bf16.mxu0 0
        %460 = vmatpush1.bf16.xpose.msra.mxu0 %v413
        %461 = vmatprep.subr.bf16.mxu0 0
        %462 = vmatpush2.bf16.xpose.msra.mxu0 %v428
        %463 = vmatprep.subr.bf16.mxu0 0
        %464 = vmatpush2.bf16.xpose.msra.mxu0 %v427
        %465 = vmatprep.subr.bf16.mxu0 0
        %466 = vmatpush2.bf16.xpose.msra.mxu0 %v426
        %467 = vmatprep.subr.bf16.mxu0 0
        %468 = vmatpush2.bf16.xpose.msra.mxu0 %v425
        %469 = vmatprep.subr.bf16.mxu0 0
        %470 = vmatpush2.bf16.xpose.msra.mxu0 %v424
        %471 = vmatprep.subr.bf16.mxu0 0
        %472 = vmatpush2.bf16.xpose.msra.mxu0 %v423
        %473 = vmatprep.subr.bf16.mxu0 0
        %474 = vmatpush2.bf16.xpose.msra.mxu0 %v422
        %475 = vmatprep.subr.bf16.mxu0 0
        %476 = vmatpush2.bf16.xpose.msra.mxu0 %v421
        %477 = vmatprep.mubr.bf16.mxu0 0
        %478 = vmatmul.mubr.bf16.gmra.mxu0 %v333
        %v479 = vpop.f32.mrf.mxu0
        %v480 = vadd.f32 0.0, %v479
        %v481 = vpop.f32.mrf.mxu0
        %v482 = vadd.f32 0.0, %v481
        %v483 = vpop.f32.mrf.mxu0
        %v484 = vadd.f32 0.0, %v483
        %v485 = vpop.f32.mrf.mxu0
        %v486 = vadd.f32 0.0, %v485
        %487 = vmatprep.mubr.bf16.mxu0 0
        %488 = vmatmul.mubr.bf16.gmra.mxu0 %v334
        %v489 = vpop.f32.mrf.mxu0
        %v490 = vadd.f32 0.0, %v489
        %v491 = vpop.f32.mrf.mxu0
        %v492 = vadd.f32 0.0, %v491
        %v493 = vpop.f32.mrf.mxu0
        %v494 = vadd.f32 0.0, %v493
        %v495 = vpop.f32.mrf.mxu0
        %v496 = vadd.f32 0.0, %v495
        %497 = vmatprep.mubr.bf16.mxu0 0
        %498 = vmatmul.mubr.bf16.gmra.mxu0 %v335
        %v499 = vpop.f32.mrf.mxu0
        %v500 = vadd.f32 0.0, %v499
        %v501 = vpop.f32.mrf.mxu0
        %v502 = vadd.f32 0.0, %v501
        %v503 = vpop.f32.mrf.mxu0
        %v504 = vadd.f32 0.0, %v503
        %v505 = vpop.f32.mrf.mxu0
        %v506 = vadd.f32 0.0, %v505
        %507 = vmatprep.mubr.bf16.mxu0 0
        %508 = vmatmul.mubr.bf16.gmra.mxu0 %v336
        %v509 = vpop.f32.mrf.mxu0
        %v510 = vadd.f32 0.0, %v509
        %v511 = vpop.f32.mrf.mxu0
        %v512 = vadd.f32 0.0, %v511
        %v513 = vpop.f32.mrf.mxu0
        %v514 = vadd.f32 0.0, %v513
        %v515 = vpop.f32.mrf.mxu0
        %v516 = vadd.f32 0.0, %v515
        %517 = vmatprep.mubr.bf16.mxu0 0
        %518 = vmatmul.mubr.bf16.gmra.mxu0 %v337
        %v519 = vpop.f32.mrf.mxu0
        %v520 = vadd.f32 0.0, %v519
        %v521 = vpop.f32.mrf.mxu0
        %v522 = vadd.f32 0.0, %v521
        %v523 = vpop.f32.mrf.mxu0
        %v524 = vadd.f32 0.0, %v523
        %v525 = vpop.f32.mrf.mxu0
        %v526 = vadd.f32 0.0, %v525
        %527 = vmatprep.mubr.bf16.mxu0 0
        %528 = vmatmul.mubr.bf16.gmra.mxu0 %v338
        %v529 = vpop.f32.mrf.mxu0
        %v530 = vadd.f32 0.0, %v529
        %v531 = vpop.f32.mrf.mxu0
        %v532 = vadd.f32 0.0, %v531
        %v533 = vpop.f32.mrf.mxu0
        %v534 = vadd.f32 0.0, %v533
        %v535 = vpop.f32.mrf.mxu0
        %v536 = vadd.f32 0.0, %v535
        %537 = vmatprep.mubr.bf16.mxu0 0
        %538 = vmatmul.mubr.bf16.gmra.mxu0 %v339
        %v539 = vpop.f32.mrf.mxu0
        %v540 = vadd.f32 0.0, %v539
        %v541 = vpop.f32.mrf.mxu0
        %v542 = vadd.f32 0.0, %v541
        %v543 = vpop.f32.mrf.mxu0
        %v544 = vadd.f32 0.0, %v543
        %v545 = vpop.f32.mrf.mxu0
        %v546 = vadd.f32 0.0, %v545
        %547 = vmatprep.mubr.bf16.mxu0 0
        %548 = vmatmul.mubr.bf16.gmra.mxu0 %v340
        %v549 = vpop.f32.mrf.mxu0
        %v550 = vadd.f32 0.0, %v549
        %v551 = vpop.f32.mrf.mxu0
        %v552 = vadd.f32 0.0, %v551
        %v553 = vpop.f32.mrf.mxu0
        %v554 = vadd.f32 0.0, %v553
        %v555 = vpop.f32.mrf.mxu0
        %v556 = vadd.f32 0.0, %v555
        %557 = vdwg.mxu0
        %v558 = vmax.f32 %v480, %v482
        %559 = vmax.xlane.f32.xlu0 %v558
        %v560 = vpop.xlane.xlu0 %559
        %v561 = vmax.f32 %v484, %v486
        %562 = vmax.xlane.f32.xlu0 %v561
        %v563 = vpop.xlane.xlu0 %562
        %v564 = vmax.f32 %v490, %v492
        %565 = vmax.xlane.f32.xlu0 %v564
        %v566 = vpop.xlane.xlu0 %565
        %v567 = vmax.f32 %v494, %v496
        %568 = vmax.xlane.f32.xlu0 %v567
        %v569 = vpop.xlane.xlu0 %568
        %v570 = vmax.f32 %v500, %v502
        %571 = vmax.xlane.f32.xlu0 %v570
        %v572 = vpop.xlane.xlu0 %571
        %v573 = vmax.f32 %v504, %v506
        %574 = vmax.xlane.f32.xlu0 %v573
        %v575 = vpop.xlane.xlu0 %574
        %v576 = vmax.f32 %v510, %v512
        %577 = vmax.xlane.f32.xlu0 %v576
        %v578 = vpop.xlane.xlu0 %577
        %v579 = vmax.f32 %v514, %v516
        %580 = vmax.xlane.f32.xlu0 %v579
        %v581 = vpop.xlane.xlu0 %580
        %v582 = vmax.f32 %v520, %v522
        %583 = vmax.xlane.f32.xlu0 %v582
        %v584 = vpop.xlane.xlu0 %583
        %v585 = vmax.f32 %v524, %v526
        %586 = vmax.xlane.f32.xlu0 %v585
        %v587 = vpop.xlane.xlu0 %586
        %v588 = vmax.f32 %v530, %v532
        %589 = vmax.xlane.f32.xlu0 %v588
        %v590 = vpop.xlane.xlu0 %589
        %v591 = vmax.f32 %v534, %v536
        %592 = vmax.xlane.f32.xlu0 %v591
        %v593 = vpop.xlane.xlu0 %592
        %v594 = vmax.f32 %v540, %v542
        %595 = vmax.xlane.f32.xlu0 %v594
        %v596 = vpop.xlane.xlu0 %595
        %v597 = vmax.f32 %v544, %v546
        %598 = vmax.xlane.f32.xlu0 %v597
        %v599 = vpop.xlane.xlu0 %598
        %v600 = vmax.f32 %v550, %v552
        %601 = vmax.xlane.f32.xlu0 %v600
        %v602 = vpop.xlane.xlu0 %601
        %v603 = vmax.f32 %v554, %v556
        %604 = vmax.xlane.f32.xlu0 %v603
        %v605 = vpop.xlane.xlu0 %604
        %v606 = vsub.f32 -inf, %v560
        %v607 = vsub.f32 -inf, %v563
        %v608 = vsub.f32 -inf, %v566
        %v609 = vsub.f32 -inf, %v569
        %v610 = vsub.f32 -inf, %v572
        %v611 = vsub.f32 -inf, %v575
        %v612 = vsub.f32 -inf, %v578
        %v613 = vsub.f32 -inf, %v581
        %v614 = vsub.f32 -inf, %v584
        %v615 = vsub.f32 -inf, %v587
        %v616 = vsub.f32 -inf, %v590
        %v617 = vsub.f32 -inf, %v593
        %v618 = vsub.f32 -inf, %v596
        %v619 = vsub.f32 -inf, %v599
        %v620 = vsub.f32 -inf, %v602
        %v621 = vsub.f32 -inf, %v605
        %v622 = vmul.f32 %v606, 1.442695
        %v623 = vpow.pop %v622
        %v624 = vmul.f32 %v607, 1.442695
        %v625 = vpow.pop %v624
        %v626 = vmul.f32 %v608, 1.442695
        %v627 = vpow.pop %v626
        %v628 = vmul.f32 %v609, 1.442695
        %v629 = vpow.pop %v628
        %v630 = vmul.f32 %v610, 1.442695
        %v631 = vpow.pop %v630
        %v632 = vmul.f32 %v611, 1.442695
        %v633 = vpow.pop %v632
        %v634 = vmul.f32 %v612, 1.442695
        %v635 = vpow.pop %v634
        %v636 = vmul.f32 %v613, 1.442695
        %v637 = vpow.pop %v636
        %v638 = vmul.f32 %v614, 1.442695
        %v639 = vpow.pop %v638
        %v640 = vmul.f32 %v615, 1.442695
        %v641 = vpow.pop %v640
        %v642 = vmul.f32 %v616, 1.442695
        %v643 = vpow.pop %v642
        %v644 = vmul.f32 %v617, 1.442695
        %v645 = vpow.pop %v644
        %v646 = vmul.f32 %v618, 1.442695
        %v647 = vpow.pop %v646
        %v648 = vmul.f32 %v619, 1.442695
        %v649 = vpow.pop %v648
        %v650 = vmul.f32 %v620, 1.442695
        %v651 = vpow.pop %v650
        %v652 = vmul.f32 %v621, 1.442695
        %v653 = vpow.pop %v652
        %v654 = vsub.f32 %v480, %v560
        %v655 = vsub.f32 %v482, %v560
        %v656 = vsub.f32 %v484, %v563
        %v657 = vsub.f32 %v486, %v563
        %v658 = vsub.f32 %v490, %v566
        %v659 = vsub.f32 %v492, %v566
        %v660 = vsub.f32 %v494, %v569
        %v661 = vsub.f32 %v496, %v569
        %v662 = vsub.f32 %v500, %v572
        %v663 = vsub.f32 %v502, %v572
        %v664 = vsub.f32 %v504, %v575
        %v665 = vsub.f32 %v506, %v575
        %v666 = vsub.f32 %v510, %v578
        %v667 = vsub.f32 %v512, %v578
        %v668 = vsub.f32 %v514, %v581
        %v669 = vsub.f32 %v516, %v581
        %v670 = vsub.f32 %v520, %v584
        %v671 = vsub.f32 %v522, %v584
        %v672 = vsub.f32 %v524, %v587
        %v673 = vsub.f32 %v526, %v587
        %v674 = vsub.f32 %v530, %v590
        %v675 = vsub.f32 %v532, %v590
        %v676 = vsub.f32 %v534, %v593
        %v677 = vsub.f32 %v536, %v593
        %v678 = vsub.f32 %v540, %v596
        %v679 = vsub.f32 %v542, %v596
        %v680 = vsub.f32 %v544, %v599
        %v681 = vsub.f32 %v546, %v599
        %v682 = vsub.f32 %v550, %v602
        %v683 = vsub.f32 %v552, %v602
        %v684 = vsub.f32 %v554, %v605
        %v685 = vsub.f32 %v556, %v605
        %v686 = vmul.f32 %v654, 1.442695
        %v687 = vpow.pop %v686
        %v688 = vmul.f32 %v655, 1.442695
        %v689 = vpow.pop %v688
        %v690 = vmul.f32 %v656, 1.442695
        %v691 = vpow.pop %v690
        %v692 = vmul.f32 %v657, 1.442695
        %v693 = vpow.pop %v692
        %v694 = vmul.f32 %v658, 1.442695
        %v695 = vpow.pop %v694
        %v696 = vmul.f32 %v659, 1.442695
        %v697 = vpow.pop %v696
        %v698 = vmul.f32 %v660, 1.442695
        %v699 = vpow.pop %v698
        %v700 = vmul.f32 %v661, 1.442695
        %v701 = vpow.pop %v700
        %v702 = vmul.f32 %v662, 1.442695
        %v703 = vpow.pop %v702
        %v704 = vmul.f32 %v663, 1.442695
        %v705 = vpow.pop %v704
        %v706 = vmul.f32 %v664, 1.442695
        %v707 = vpow.pop %v706
        %v708 = vmul.f32 %v665, 1.442695
        %v709 = vpow.pop %v708
        %v710 = vmul.f32 %v666, 1.442695
        %v711 = vpow.pop %v710
        %v712 = vmul.f32 %v667, 1.442695
        %v713 = vpow.pop %v712
        %v714 = vmul.f32 %v668, 1.442695
        %v715 = vpow.pop %v714
        %v716 = vmul.f32 %v669, 1.442695
        %v717 = vpow.pop %v716
        %v718 = vmul.f32 %v670, 1.442695
        %v719 = vpow.pop %v718
        %v720 = vmul.f32 %v671, 1.442695
        %v721 = vpow.pop %v720
        %v722 = vmul.f32 %v672, 1.442695
        %v723 = vpow.pop %v722
        %v724 = vmul.f32 %v673, 1.442695
        %v725 = vpow.pop %v724
        %v726 = vmul.f32 %v674, 1.442695
        %v727 = vpow.pop %v726
        %v728 = vmul.f32 %v675, 1.442695
        %v729 = vpow.pop %v728
        %v730 = vmul.f32 %v676, 1.442695
        %v731 = vpow.pop %v730
        %v732 = vmul.f32 %v677, 1.442695
        %v733 = vpow.pop %v732
        %v734 = vmul.f32 %v678, 1.442695
        %v735 = vpow.pop %v734
        %v736 = vmul.f32 %v679, 1.442695
        %v737 = vpow.pop %v736
        %v738 = vmul.f32 %v680, 1.442695
        %v739 = vpow.pop %v738
        %v740 = vmul.f32 %v681, 1.442695
        %v741 = vpow.pop %v740
        %v742 = vmul.f32 %v682, 1.442695
        %v743 = vpow.pop %v742
        %v744 = vmul.f32 %v683, 1.442695
        %v745 = vpow.pop %v744
        %v746 = vmul.f32 %v684, 1.442695
        %v747 = vpow.pop %v746
        %v748 = vmul.f32 %v685, 1.442695
        %v749 = vpow.pop %v748
        %v750 = vmul.f32 %v623, 0.0
        %v751 = vmul.f32 %v625, 0.0
        %v752 = vmul.f32 %v627, 0.0
        %v753 = vmul.f32 %v629, 0.0
        %v754 = vmul.f32 %v631, 0.0
        %v755 = vmul.f32 %v633, 0.0
        %v756 = vmul.f32 %v635, 0.0
        %v757 = vmul.f32 %v637, 0.0
        %v758 = vmul.f32 %v639, 0.0
        %v759 = vmul.f32 %v641, 0.0
        %v760 = vmul.f32 %v643, 0.0
        %v761 = vmul.f32 %v645, 0.0
        %v762 = vmul.f32 %v647, 0.0
        %v763 = vmul.f32 %v649, 0.0
        %v764 = vmul.f32 %v651, 0.0
        %v765 = vmul.f32 %v653, 0.0
        %v766 = vadd.f32 %v687, %v689
        %767 = vadd.xlane.f32.xlu0 %v766
        %v768 = vpop.xlane.xlu0 %767
        %v769 = vadd.f32 %v691, %v693
        %770 = vadd.xlane.f32.xlu0 %v769
        %v771 = vpop.xlane.xlu0 %770
        %v772 = vadd.f32 %v695, %v697
        %773 = vadd.xlane.f32.xlu0 %v772
        %v774 = vpop.xlane.xlu0 %773
        %v775 = vadd.f32 %v699, %v701
        %776 = vadd.xlane.f32.xlu0 %v775
        %v777 = vpop.xlane.xlu0 %776
        %v778 = vadd.f32 %v703, %v705
        %779 = vadd.xlane.f32.xlu0 %v778
        %v780 = vpop.xlane.xlu0 %779
        %v781 = vadd.f32 %v707, %v709
        %782 = vadd.xlane.f32.xlu0 %v781
        %v783 = vpop.xlane.xlu0 %782
        %v784 = vadd.f32 %v711, %v713
        %785 = vadd.xlane.f32.xlu0 %v784
        %v786 = vpop.xlane.xlu0 %785
        %v787 = vadd.f32 %v715, %v717
        %788 = vadd.xlane.f32.xlu0 %v787
        %v789 = vpop.xlane.xlu0 %788
        %v790 = vadd.f32 %v719, %v721
        %791 = vadd.xlane.f32.xlu0 %v790
        %v792 = vpop.xlane.xlu0 %791
        %v793 = vadd.f32 %v723, %v725
        %794 = vadd.xlane.f32.xlu0 %v793
        %v795 = vpop.xlane.xlu0 %794
        %v796 = vadd.f32 %v727, %v729
        %797 = vadd.xlane.f32.xlu0 %v796
        %v798 = vpop.xlane.xlu0 %797
        %v799 = vadd.f32 %v731, %v733
        %800 = vadd.xlane.f32.xlu0 %v799
        %v801 = vpop.xlane.xlu0 %800
        %v802 = vadd.f32 %v735, %v737
        %803 = vadd.xlane.f32.xlu0 %v802
        %v804 = vpop.xlane.xlu0 %803
        %v805 = vadd.f32 %v739, %v741
        %806 = vadd.xlane.f32.xlu0 %v805
        %v807 = vpop.xlane.xlu0 %806
        %v808 = vadd.f32 %v743, %v745
        %809 = vadd.xlane.f32.xlu0 %v808
        %v810 = vpop.xlane.xlu0 %809
        %v811 = vadd.f32 %v747, %v749
        %812 = vadd.xlane.f32.xlu0 %v811
        %v813 = vpop.xlane.xlu0 %812
        %v814 = vadd.f32 %v750, %v768
        %v815 = vadd.f32 %v751, %v771
        %v816 = vadd.f32 %v752, %v774
        %v817 = vadd.f32 %v753, %v777
        %v818 = vadd.f32 %v754, %v780
        %v819 = vadd.f32 %v755, %v783
        %v820 = vadd.f32 %v756, %v786
        %v821 = vadd.f32 %v757, %v789
        %v822 = vadd.f32 %v758, %v792
        %v823 = vadd.f32 %v759, %v795
        %v824 = vadd.f32 %v760, %v798
        %v825 = vadd.f32 %v761, %v801
        %v826 = vadd.f32 %v762, %v804
        %v827 = vadd.f32 %v763, %v807
        %v828 = vadd.f32 %v764, %v810
        %v829 = vadd.f32 %v765, %v813
        %v830 = vpack.c.bf16 %v691, %v687
        %v831 = vpack.c.bf16 %v693, %v689
        %v832 = vpack.c.bf16 %v699, %v695
        %v833 = vpack.c.bf16 %v701, %v697
        %v834 = vpack.c.bf16 %v707, %v703
        %v835 = vpack.c.bf16 %v709, %v705
        %v836 = vpack.c.bf16 %v715, %v711
        %v837 = vpack.c.bf16 %v717, %v713
        %v838 = vpack.c.bf16 %v723, %v719
        %v839 = vpack.c.bf16 %v725, %v721
        %v840 = vpack.c.bf16 %v731, %v727
        %v841 = vpack.c.bf16 %v733, %v729
        %v842 = vpack.c.bf16 %v739, %v735
        %v843 = vpack.c.bf16 %v741, %v737
        %v844 = vpack.c.bf16 %v747, %v743
        %v845 = vpack.c.bf16 %v749, %v745
        %v878 = vunpack.c.l.b16 %v269
        %v879 = vunpack.c.l.b16 %v270
        %v880 = vunpack.c.l.b16 %v271
        %v881 = vunpack.c.l.b16 %v272
        %v882 = vunpack.c.l.b16 %v273
        %v883 = vunpack.c.l.b16 %v274
        %v884 = vunpack.c.l.b16 %v275
        %v885 = vunpack.c.l.b16 %v276
        %v886 = vunpack.c.l.b16 %v277
        %v887 = vunpack.c.l.b16 %v278
        %v888 = vunpack.c.l.b16 %v279
        %v889 = vunpack.c.l.b16 %v280
        %v890 = vunpack.c.l.b16 %v281
        %v891 = vunpack.c.l.b16 %v282
        %v892 = vunpack.c.l.b16 %v283
        %v893 = vunpack.c.l.b16 %v284
        %v894 = vunpack.c.l.b16 %v285
        %v895 = vunpack.c.l.b16 %v286
        %v896 = vunpack.c.l.b16 %v287
        %v897 = vunpack.c.l.b16 %v288
        %v898 = vunpack.c.l.b16 %v289
        %v899 = vunpack.c.l.b16 %v290
        %v900 = vunpack.c.l.b16 %v291
        %v901 = vunpack.c.l.b16 %v292
        %v902 = vunpack.c.l.b16 %v293
        %v903 = vunpack.c.l.b16 %v294
        %v904 = vunpack.c.l.b16 %v295
        %v905 = vunpack.c.l.b16 %v296
        %v906 = vunpack.c.l.b16 %v297
        %v907 = vunpack.c.l.b16 %v298
        %v908 = vunpack.c.l.b16 %v299
        %v909 = vunpack.c.l.b16 %v300
        %v910 = vpack.c.b16 %v879, %v878
        %v911 = vpack.c.b16 %v881, %v880
        %v912 = vpack.c.b16 %v883, %v882
        %v913 = vpack.c.b16 %v885, %v884
        %v914 = vpack.c.b16 %v887, %v886
        %v915 = vpack.c.b16 %v889, %v888
        %v916 = vpack.c.b16 %v891, %v890
        %v917 = vpack.c.b16 %v893, %v892
        %v918 = vpack.c.b16 %v895, %v894
        %v919 = vpack.c.b16 %v897, %v896
        %v920 = vpack.c.b16 %v899, %v898
        %v921 = vpack.c.b16 %v901, %v900
        %v922 = vpack.c.b16 %v903, %v902
        %v923 = vpack.c.b16 %v905, %v904
        %v924 = vpack.c.b16 %v907, %v906
        %v925 = vpack.c.b16 %v909, %v908
        %942 = vmatprep.subr.bf16.mxu0 0
        %943 = vmatpush1.bf16.msra.mxu0 %v917
        %944 = vmatprep.subr.bf16.mxu0 0
        %945 = vmatpush1.bf16.msra.mxu0 %v916
        %946 = vmatprep.subr.bf16.mxu0 0
        %947 = vmatpush1.bf16.msra.mxu0 %v915
        %948 = vmatprep.subr.bf16.mxu0 0
        %949 = vmatpush1.bf16.msra.mxu0 %v914
        %950 = vmatprep.subr.bf16.mxu0 0
        %951 = vmatpush1.bf16.msra.mxu0 %v913
        %952 = vmatprep.subr.bf16.mxu0 0
        %953 = vmatpush1.bf16.msra.mxu0 %v912
        %954 = vmatprep.subr.bf16.mxu0 0
        %955 = vmatpush1.bf16.msra.mxu0 %v911
        %956 = vmatprep.subr.bf16.mxu0 0
        %957 = vmatpush1.bf16.msra.mxu0 %v910
        %958 = vmatprep.subr.bf16.mxu0 0
        %959 = vmatpush2.bf16.msra.mxu0 %v925
        %960 = vmatprep.subr.bf16.mxu0 0
        %961 = vmatpush2.bf16.msra.mxu0 %v924
        %962 = vmatprep.subr.bf16.mxu0 0
        %963 = vmatpush2.bf16.msra.mxu0 %v923
        %964 = vmatprep.subr.bf16.mxu0 0
        %965 = vmatpush2.bf16.msra.mxu0 %v922
        %966 = vmatprep.subr.bf16.mxu0 0
        %967 = vmatpush2.bf16.msra.mxu0 %v921
        %968 = vmatprep.subr.bf16.mxu0 0
        %969 = vmatpush2.bf16.msra.mxu0 %v920
        %970 = vmatprep.subr.bf16.mxu0 0
        %971 = vmatpush2.bf16.msra.mxu0 %v919
        %972 = vmatprep.subr.bf16.mxu0 0
        %973 = vmatpush2.bf16.msra.mxu0 %v918
        %974 = vmatprep.mubr.bf16.mxu0 %v831
        %975 = vmatmul.mubr.bf16.gmra.mxu0 %v830
        %v976 = vpop.f32.mrf.mxu0
        %v977 = vadd.f32 0.0, %v976
        %v978 = vpop.f32.mrf.mxu0
        %v979 = vpop.f32.mrf.mxu0
        %v980 = vadd.f32 0.0, %v979
        %v981 = vpop.f32.mrf.mxu0
        %982 = vmatprep.mubr.bf16.mxu0 %v833
        %983 = vmatmul.mubr.bf16.gmra.mxu0 %v832
        %v984 = vpop.f32.mrf.mxu0
        %v985 = vadd.f32 0.0, %v984
        %v986 = vpop.f32.mrf.mxu0
        %v987 = vpop.f32.mrf.mxu0
        %v988 = vadd.f32 0.0, %v987
        %v989 = vpop.f32.mrf.mxu0
        %990 = vmatprep.mubr.bf16.mxu0 %v835
        %991 = vmatmul.mubr.bf16.gmra.mxu0 %v834
        %v992 = vpop.f32.mrf.mxu0
        %v993 = vadd.f32 0.0, %v992
        %v994 = vpop.f32.mrf.mxu0
        %v995 = vpop.f32.mrf.mxu0
        %v996 = vadd.f32 0.0, %v995
        %v997 = vpop.f32.mrf.mxu0
        %998 = vmatprep.mubr.bf16.mxu0 %v837
        %999 = vmatmul.mubr.bf16.gmra.mxu0 %v836
        %v1000 = vpop.f32.mrf.mxu0
        %v1001 = vadd.f32 0.0, %v1000
        %v1002 = vpop.f32.mrf.mxu0
        %v1003 = vpop.f32.mrf.mxu0
        %v1004 = vadd.f32 0.0, %v1003
        %v1005 = vpop.f32.mrf.mxu0
        %1006 = vmatprep.mubr.bf16.mxu0 %v839
        %1007 = vmatmul.mubr.bf16.gmra.mxu0 %v838
        %v1008 = vpop.f32.mrf.mxu0
        %v1009 = vadd.f32 0.0, %v1008
        %v1010 = vpop.f32.mrf.mxu0
        %v1011 = vpop.f32.mrf.mxu0
        %v1012 = vadd.f32 0.0, %v1011
        %v1013 = vpop.f32.mrf.mxu0
        %1014 = vmatprep.mubr.bf16.mxu0 %v841
        %1015 = vmatmul.mubr.bf16.gmra.mxu0 %v840
        %v1016 = vpop.f32.mrf.mxu0
        %v1017 = vadd.f32 0.0, %v1016
        %v1018 = vpop.f32.mrf.mxu0
        %v1019 = vpop.f32.mrf.mxu0
        %v1020 = vadd.f32 0.0, %v1019
        %v1021 = vpop.f32.mrf.mxu0
        %1022 = vmatprep.mubr.bf16.mxu0 %v843
        %1023 = vmatmul.mubr.bf16.gmra.mxu0 %v842
        %v1024 = vpop.f32.mrf.mxu0
        %v1025 = vadd.f32 0.0, %v1024
        %v1026 = vpop.f32.mrf.mxu0
        %v1027 = vpop.f32.mrf.mxu0
        %v1028 = vadd.f32 0.0, %v1027
        %v1029 = vpop.f32.mrf.mxu0
        %1030 = vmatprep.mubr.bf16.mxu0 %v845
        %1031 = vmatmul.mubr.bf16.gmra.mxu0 %v844
        %v1032 = vpop.f32.mrf.mxu0
        %v1033 = vadd.f32 0.0, %v1032
        %v1034 = vpop.f32.mrf.mxu0
        %v1035 = vpop.f32.mrf.mxu0
        %v1036 = vadd.f32 0.0, %v1035
        %v1037 = vpop.f32.mrf.mxu0
        %1038 = vdwg.mxu0
        %v1039 = vadd.f32 %v750, %v977
        %v1040 = vadd.f32 %v751, %v980
        %v1041 = vadd.f32 %v752, %v985
        %v1042 = vadd.f32 %v753, %v988
        %v1043 = vadd.f32 %v754, %v993
        %v1044 = vadd.f32 %v755, %v996
        %v1045 = vadd.f32 %v756, %v1001
        %v1046 = vadd.f32 %v757, %v1004
        %v1047 = vadd.f32 %v758, %v1009
        %v1048 = vadd.f32 %v759, %v1012
        %v1049 = vadd.f32 %v760, %v1017
        %v1050 = vadd.f32 %v761, %v1020
        %v1051 = vadd.f32 %v762, %v1025
        %v1052 = vadd.f32 %v763, %v1028
        %v1053 = vadd.f32 %v764, %v1033
        %v1054 = vadd.f32 %v765, %v1036
        %v1055 = vrcp.pop %v814
        %v1056 = vrcp.pop %v815
        %v1057 = vrcp.pop %v816
        %v1058 = vrcp.pop %v817
        %v1059 = vrcp.pop %v818
        %v1060 = vrcp.pop %v819
        %v1061 = vrcp.pop %v820
        %v1062 = vrcp.pop %v821
        %v1063 = vrcp.pop %v822
        %v1064 = vrcp.pop %v823
        %v1065 = vrcp.pop %v824
        %v1066 = vrcp.pop %v825
        %v1067 = vrcp.pop %v826
        %v1068 = vrcp.pop %v827
        %v1069 = vrcp.pop %v828
        %v1070 = vrcp.pop %v829
        %v1071 = vmul.f32 %v1039, %v1055
        %v1072 = vmul.f32 %v1040, %v1056
        %v1073 = vmul.f32 %v1041, %v1057
        %v1074 = vmul.f32 %v1042, %v1058
        %v1075 = vmul.f32 %v1043, %v1059
        %v1076 = vmul.f32 %v1044, %v1060
        %v1077 = vmul.f32 %v1045, %v1061
        %v1078 = vmul.f32 %v1046, %v1062
        %v1079 = vmul.f32 %v1047, %v1063
        %v1080 = vmul.f32 %v1048, %v1064
        %v1081 = vmul.f32 %v1049, %v1065
        %v1082 = vmul.f32 %v1050, %v1066
        %v1083 = vmul.f32 %v1051, %v1067
        %v1084 = vmul.f32 %v1052, %v1068
        %v1085 = vmul.f32 %v1053, %v1069
        %v1086 = vmul.f32 %v1054, %v1070
        %1087 = vst [vmem:[%s217] sm:$0xff] %v1071
        %1088 = vst [vmem:[%s217 + $0x8] sm:$0xff] %v1072
        %1089 = vst [vmem:[%s217 + $0x10] sm:$0xff] %v1073
        %1090 = vst [vmem:[%s217 + $0x18] sm:$0xff] %v1074
        %1091 = vst [vmem:[%s217 + $0x20] sm:$0xff] %v1075
        %1092 = vst [vmem:[%s217 + $0x28] sm:$0xff] %v1076
        %1093 = vst [vmem:[%s217 + $0x30] sm:$0xff] %v1077
        %1094 = vst [vmem:[%s217 + $0x38] sm:$0xff] %v1078
        %1095 = vst [vmem:[%s217 + $0x40] sm:$0xff] %v1079
        %1096 = vst [vmem:[%s217 + $0x48] sm:$0xff] %v1080
        %1097 = vst [vmem:[%s217 + $0x50] sm:$0xff] %v1081
        %1098 = vst [vmem:[%s217 + $0x58] sm:$0xff] %v1082
        %1099 = vst [vmem:[%s217 + $0x60] sm:$0xff] %v1083
        %1100 = vst [vmem:[%s217 + $0x68] sm:$0xff] %v1084
        %1101 = vst [vmem:[%s217 + $0x70] sm:$0xff] %v1085
        %1102 = vst [vmem:[%s217 + $0x78] sm:$0xff] %v1086
        %s1103 = sand.u32 %s97, 1
        %s1104 = scalar_lea.sflag [#allocation4], %s1103
        %s1105 = sand.u32 %s97, 1
        %s1106 = smul.addr %s1105, 128
        %s1107 = scalar_lea.vmem [#allocation8], %s1106
        // Predicated region
        $region45: #{tpu_custom_call.1} parent=31 // pred_check
          %p1108 = pneg %p107
        $region46: #{tpu_custom_call.1} parent=31 // pred_check_branch
          %1110 = sbr.rel (%p1108) target = $region48
        $region47: #{tpu_custom_call.1} parent=31 // pred_region
          %s1111 = smul.u32 16, %s21
          %s1113 = ssub.s32 2048, 2048
          %1114 = vsyncadd %s1104, %s1113
          %s1115 = smul.addr %s1111, 128
          %s1116 = scalar_lea.hbm %s3, %s1115
          %s1117 = sshll.u32 %s1107, 4
          %s1118 = int_to_ptr.vmem [resolvable:$true] %s1117
          %1123 = dma.vmem_to_hbm [thread:$0]  %s1118, 2048, %s1116, %s1104, 128, 128, 8
        $region48: #{tpu_custom_call.1} parent=31 // pred_fallthru
          _
      $region32: #{tpu_custom_call.1} parent=5 // pred_fallthru
        _
      %p1124 = scmp.le.s32.totalorder 2, %s16
      // Predicated region
      $region49: #{tpu_custom_call.1} parent=5 // pred_check
        %p1125 = pneg %p1124
      $region50: #{tpu_custom_call.1} parent=5 // pred_check_branch
        %1127 = sbr.rel (%p1125) target = $region52
      $region51: #{tpu_custom_call.1} parent=5 // pred_region
        %s1128 = ssub.s32 %s16, 2
        // Predicated region
        $region53: #{tpu_custom_call.1} parent=51 // pred_check
          %p1129 = pneg %p113
        $region54: #{tpu_custom_call.1} parent=51 // pred_check_branch
          %1131 = sbr.rel (%p1129) target = $region56
        $region55: #{tpu_custom_call.1} parent=51 // pred_region
          %s1132 = sand.u32 %s98, 1
          %s1133 = scalar_lea.sflag [#allocation4], %s1132
          %s1134 = sand.u32 %s98, 1
          %s1135 = smul.addr %s1134, 128
          %s1136 = scalar_lea.vmem [#allocation8], %s1135
          %1137 = dma.done %s1133, 2048
        $region56: #{tpu_custom_call.1} parent=51 // pred_fallthru
          _
      $region52: #{tpu_custom_call.1} parent=5 // pred_fallthru
        _
    $region6: #{tpu_custom_call.1} parent=1 // loop_footer
      %s20 = sadd.s32 1, %s16
    $region7: #{tpu_custom_call.1} parent=1 // loop_footer_branch
      %15 = sbr.rel target = $region3
    $region8: #{tpu_custom_call.1} parent=1 // loop_exit
      _
    %1138 = vsyncpa [#allocation3], 1
    %s1139 = scalar_lea.sflag [#allocation3], 1
    %1140 = vsyncpa %s1139, 1
    %1141 = vsyncpa [#allocation6], 1
    %1142 = vsyncpa [#allocation4], 1
    %s1143 = scalar_lea.sflag [#allocation4], 1
    %1144 = vsyncpa %s1143, 1

// kernel: tpu_custom_call.1
$region0: #{tpu_custom_call.1}
  #allocation0 [shape = 'u32[]', space=smem, size = 0x4, offset = 0x4, fixed_abs, tag = 'smem constant byte address 0x4 - core index']
  #allocation1 [shape = 'u32[144,128]{1,0:T(1,128)}', space=vmem, size = 0x12000, scoped, tag = 'internal scratch']
  %s0 = inlined_call_operand.hbm [shape: bf16[256,128], index: 0, kind: input, shape index: {}]
  %s1 = inlined_call_operand.hbm [shape: bf16[256,128], index: 1, kind: input, shape index: {}]
  %s2 = inlined_call_operand.hbm [shape: bf16[256,128], index: 2, kind: input, shape index: {}]
  %s3 = inlined_call_operand.hbm [shape: f32[256,128], index: 3, kind: output, shape index: {}]
  %s4 = sld [smem:[#allocation0]]
  $region57: #{tpu_custom_call.1} parent=0
    _
  %s6 = ssub.s32 1, %s4
  %s7 = scalar_select 0, %s6, %s4
  $region1: #{tpu_custom_call.1} parent=0
    #allocation2 [shape = 'u8[65536]{0}', space=vmem, size = 0x10000, scoped, tag = 'input window, operand 0']
    #allocation3 [shape = 's32[2]{0}', space=sflag, size = 0x8, scoped, tag = 'scoped memory for tpu_custom_call.1']
    #allocation4 [shape = 's32[2]{0}', space=sflag, size = 0x8, scoped, tag = 'scoped memory for tpu_custom_call.1']
    #allocation5 [shape = 'u8[65536]{0}', space=vmem, size = 0x10000, scoped, tag = 'input window, operand 1, single buffered']
    #allocation6 [shape = 's32[1]{0}', space=sflag, size = 0x4, scoped, tag = 'scoped memory for tpu_custom_call.1']
    #allocation7 [shape = 'u8[65536]{0}', space=vmem, size = 0x10000, scoped, tag = 'input window, operand 2, single buffered']
    #allocation8 [shape = 'u8[131072]{0}', space=vmem, size = 0x20000, scoped, tag = 'output window, operand 0']
    %8 = vsyncpa [#allocation3], 0
    %s9 = scalar_lea.sflag [#allocation3], 1
    %10 = vsyncpa %s9, 0
    %11 = vsyncpa [#allocation6], 0
    %12 = vsyncpa [#allocation4], 0
    %s13 = scalar_lea.sflag [#allocation4], 1
    %14 = vsyncpa %s13, 0
    loop: start=0, step=1, limit=4
    $region2: #{tpu_custom_call.1} parent=1 // loop_pre_header
      _
    $region3: #{tpu_custom_call.1} parent=1 // loop_header
      %s16 = sphi 0, %s20
      %p17 = scmp.ge.s32.totalorder %s16, 4
      %s26 = sphi 0, %s28
      %s29 = sphi 0, %s26
      %s30 = sphi 0, %s29
      %s46 = sphi 0, %s30
      %s50 = sphi 0, %s50
      %s52 = sphi 0, %s50
      %s53 = sphi 0, %s52
      %s67 = sphi 0, %s53
      %s71 = sphi 0, %s71
      %s73 = sphi 0, %s71
      %s74 = sphi 0, %s73
      %s88 = sphi 0, %s74
      %s94 = sphi 0, %s96
      %s97 = sphi 0, %s94
      %s98 = sphi 0, %s97
      %s114 = sphi 0, %s98
    $region4: #{tpu_custom_call.1} parent=1 // loop_header_branch
      %19 = sbr.rel (%p17) target = $region8
    $region5: #{tpu_custom_call.1} parent=1 // loop_body
      %s21 = ssub.s32 %s16, 1
      %s22 = ssub.s32 %s16, 2
      %s23 = sadd.s32 %s16, 1
      %s24 = ssub.s32 %s16, %s23
      %p25 = scmp.eq.s32.totalorder %s24, 0
      %s27 = sadd.s32 %s26, 1
      %s28 = scalar_select %p25, %s26, %s27
      %p31 = pneg %p25
      %p32 = scmp.eq.s32.totalorder %s16, 1
      %p33 = por %p31, %p32
      %p34 = scmp.ne.s32.totalorder %s26, %s29
      %p35 = scmp.eq.s32.totalorder %s16, 0
      %p36 = por %p34, %p35
      %p37 = scmp.ne.s32.totalorder %s26, %s29
      %p38 = scmp.eq.s32.totalorder %s21, 1
      %p39 = por %p37, %p38
      %p40 = scmp.ne.s32.totalorder %s29, %s30
      %p41 = scmp.eq.s32.totalorder %s21, 0
      %p42 = por %p40, %p41
      %p43 = scmp.ne.s32.totalorder %s29, %s30
      %p44 = scmp.eq.s32.totalorder %s22, 1
      %p45 = por %p43, %p44
      %p47 = scmp.ne.s32.totalorder %s30, %s46
      %p48 = scmp.eq.s32.totalorder %s22, 0
      %p49 = por %p47, %p48
      %s51 = sadd.s32 %s50, 1
      %p54 = scmp.eq.s32.totalorder %s16, 1
      %p55 = scmp.ne.s32.totalorder %s50, %s52
      %p56 = scmp.eq.s32.totalorder %s16, 0
      %p57 = por %p55, %p56
      %p58 = scmp.ne.s32.totalorder %s50, %s52
      %p59 = scmp.eq.s32.totalorder %s21, 1
      %p60 = por %p58, %p59
      %p61 = scmp.ne.s32.totalorder %s52, %s53
      %p62 = scmp.eq.s32.totalorder %s21, 0
      %p63 = por %p61, %p62
      %p64 = scmp.ne.s32.totalorder %s52, %s53
      %p65 = scmp.eq.s32.totalorder %s22, 1
      %p66 = por %p64, %p65
      %p68 = scmp.ne.s32.totalorder %s53, %s67
      %p69 = scmp.eq.s32.totalorder %s22, 0
      %p70 = por %p68, %p69
      %s72 = sadd.s32 %s71, 1
      %p75 = scmp.eq.s32.totalorder %s16, 1
      %p76 = scmp.ne.s32.totalorder %s71, %s73
      %p77 = scmp.eq.s32.totalorder %s16, 0
      %p78 = por %p76, %p77
      %p79 = scmp.ne.s32.totalorder %s71, %s73
      %p80 = scmp.eq.s32.totalorder %s21, 1
      %p81 = por %p79, %p80
      %p82 = scmp.ne.s32.totalorder %s73, %s74
      %p83 = scmp.eq.s32.totalorder %s21, 0
      %p84 = por %p82, %p83
      %p85 = scmp.ne.s32.totalorder %s73, %s74
      %p86 = scmp.eq.s32.totalorder %s22, 1
      %p87 = por %p85, %p86
      %p89 = scmp.ne.s32.totalorder %s74, %s88
      %p90 = scmp.eq.s32.totalorder %s22, 0
      %p91 = por %p89, %p90
      %s92 = ssub.s32 %s16, %s23
      %p93 = scmp.eq.s32.totalorder %s92, 0
      %s95 = sadd.s32 %s94, 1
      %s96 = scalar_select %p93, %s94, %s95
      %p99 = pneg %p93
      %p100 = scmp.eq.s32.totalorder %s16, 1
      %p101 = por %p99, %p100
      %p102 = scmp.ne.s32.totalorder %s94, %s97
      %p103 = scmp.eq.s32.totalorder %s16, 0
      %p104 = por %p102, %p103
      %p105 = scmp.ne.s32.totalorder %s94, %s97
      %p106 = scmp.eq.s32.totalorder %s21, 1
      %p107 = por %p105, %p106
      %p108 = scmp.ne.s32.totalorder %s97, %s98
      %p109 = scmp.eq.s32.totalorder %s21, 0
      %p110 = por %p108, %p109
      %p111 = scmp.ne.s32.totalorder %s97, %s98
      %p112 = scmp.eq.s32.totalorder %s22, 1
      %p113 = por %p111, %p112
      %p115 = scmp.ne.s32.totalorder %s98, %s114
      %p116 = scmp.eq.s32.totalorder %s22, 0
      %p117 = por %p115, %p116
      %p118 = scmp.le.s32.totalorder 1, %s16
      %p119 = scmp.lt.s32.totalorder %s16, 3
      %p120 = pnand %p118, %p119
      %p121 = pneg %p120
      // Predicated region
      $region9: #{tpu_custom_call.1} parent=5 // pred_check
        _
      $region10: #{tpu_custom_call.1} parent=5 // pred_check_branch
        %123 = sbr.rel (%p120) target = $region12
      $region11: #{tpu_custom_call.1} parent=5 // pred_region
        %s124 = ssub.s32 %s16, 1
        // Predicated region
        $region13: #{tpu_custom_call.1} parent=11 // pred_check
          %p125 = pneg %p63
        $region14: #{tpu_custom_call.1} parent=11 // pred_check_branch
          %127 = sbr.rel (%p125) target = $region16
        $region15: #{tpu_custom_call.1} parent=11 // pred_region
          %s129 = ssub.s32 2048, 2048
          %130 = vsyncadd [#allocation6], %s129
          %s131 = sshll.u32 [#allocation5], 4
          %s132 = int_to_ptr.vmem [resolvable:$true] %s131
          %137 = dma.hbm_to_vmem [thread:$0]  %s1, 2048, %s132, [#allocation6], 64, 64, 4
        $region16: #{tpu_custom_call.1} parent=11 // pred_fallthru
          _
        // Predicated region
        $region17: #{tpu_custom_call.1} parent=11 // pred_check
          %p138 = pneg %p84
        $region18: #{tpu_custom_call.1} parent=11 // pred_check_branch
          %140 = sbr.rel (%p138) target = $region20
        $region19: #{tpu_custom_call.1} parent=11 // pred_region
          %s142 = ssub.s32 2048, 2048
          %143 = vsyncadd [#allocation6], %s142
          %s144 = sshll.u32 [#allocation7], 4
          %s145 = int_to_ptr.vmem [resolvable:$true] %s144
          %150 = dma.hbm_to_vmem [thread:$0]  %s2, 2048, %s145, [#allocation6], 64, 64, 4
        $region20: #{tpu_custom_call.1} parent=11 // pred_fallthru
          _
      $region12: #{tpu_custom_call.1} parent=5 // pred_fallthru
        _
      %p151 = scmp.lt.s32.totalorder %s16, 2
      // Predicated region
      $region21: #{tpu_custom_call.1} parent=5 // pred_check
        %p152 = pneg %p151
      $region22: #{tpu_custom_call.1} parent=5 // pred_check_branch
        %154 = sbr.rel (%p152) target = $region24
      $region23: #{tpu_custom_call.1} parent=5 // pred_region
        // Predicated region
        $region25: #{tpu_custom_call.1} parent=23 // pred_check
          %p155 = pneg %p36
        $region26: #{tpu_custom_call.1} parent=23 // pred_check_branch
          %157 = sbr.rel (%p155) target = $region28
        $region27: #{tpu_custom_call.1} parent=23 // pred_region
          %s158 = sand.u32 %s26, 1
          %s159 = scalar_lea.sflag [#allocation3], %s158
          %s160 = sand.u32 %s26, 1
          %s161 = smul.addr %s160, 64
          %s162 = scalar_lea.vmem [#allocation2], %s161
          %s163 = smul.u32 16, %s16
          %s165 = ssub.s32 1024, 1024
          %166 = vsyncadd %s159, %s165
          %s167 = smul.addr %s163, 64
          %s168 = scalar_lea.hbm %s0, %s167
          %s169 = sshll.u32 %s162, 4
          %s170 = int_to_ptr.vmem [resolvable:$true] %s169
          %175 = dma.hbm_to_vmem [thread:$0]  %s168, 1024, %s170, %s159, 64, 64, 4
        $region28: #{tpu_custom_call.1} parent=23 // pred_fallthru
          _
      $region24: #{tpu_custom_call.1} parent=5 // pred_fallthru
        _
      %p176 = scmp.le.s32.totalorder 1, %s16
      %p177 = scmp.lt.s32.totalorder %s16, 3
      %p178 = pnand %p176, %p177
      %p179 = pneg %p178
      // Predicated region
      $region29: #{tpu_custom_call.1} parent=5 // pred_check
        _
      $region30: #{tpu_custom_call.1} parent=5 // pred_check_branch
        %181 = sbr.rel (%p178) target = $region32
      $region31: #{tpu_custom_call.1} parent=5 // pred_region
        %s182 = ssub.s32 %s16, 1
        %s183 = sand.u32 %s29, 1
        %s184 = scalar_lea.sflag [#allocation3], %s183
        %s185 = sand.u32 %s29, 1
        %s186 = smul.addr %s185, 64
        %s187 = scalar_lea.vmem [#allocation2], %s186
        // Predicated region
        $region33: #{tpu_custom_call.1} parent=31 // pred_check
          %p188 = pneg %p42
        $region34: #{tpu_custom_call.1} parent=31 // pred_check_branch
          %190 = sbr.rel (%p188) target = $region36
        $region35: #{tpu_custom_call.1} parent=31 // pred_region
          %191 = dma.done %s184, 1024
        $region36: #{tpu_custom_call.1} parent=31 // pred_fallthru
          _
        // Predicated region
        $region37: #{tpu_custom_call.1} parent=31 // pred_check
          %p192 = pneg %p63
        $region38: #{tpu_custom_call.1} parent=31 // pred_check_branch
          %194 = sbr.rel (%p192) target = $region40
        $region39: #{tpu_custom_call.1} parent=31 // pred_region
          %195 = dma.done [#allocation6], 2048
        $region40: #{tpu_custom_call.1} parent=31 // pred_fallthru
          _
        // Predicated region
        $region41: #{tpu_custom_call.1} parent=31 // pred_check
          %p196 = pneg %p84
        $region42: #{tpu_custom_call.1} parent=31 // pred_check_branch
          %198 = sbr.rel (%p196) target = $region44
        $region43: #{tpu_custom_call.1} parent=31 // pred_region
          %199 = dma.done [#allocation6], 2048
        $region44: #{tpu_custom_call.1} parent=31 // pred_fallthru
          _
        %s200 = sand.u32 %s29, 1
        %s201 = scalar_lea.sflag [#allocation3], %s200
        %s202 = sand.u32 %s29, 1
        %s203 = smul.addr %s202, 64
        %s204 = scalar_lea.vmem [#allocation2], %s203
        %p205 = pneg %p42
        %p206 = pneg %p39
        %p207 = pneg %p63
        %p208 = pneg %p60
        %p209 = pneg %p84
        %p210 = pneg %p81
        %p211 = pneg %p110
        %p212 = pneg %p107
        %s213 = sand.u32 %s97, 1
        %s214 = scalar_lea.sflag [#allocation4], %s213
        %s215 = sand.u32 %s97, 1
        %s216 = smul.addr %s215, 128
        %s217 = scalar_lea.vmem [#allocation8], %s216
        %s218 = smul.u32 16, %s21
        %s219 = smul.u32 16, %s21
        %v221 = vld [vmem:[%s187] sm:$0xf]
        %v222 = vld [vmem:[%s187 + $0x4] sm:$0xf]
        %v223 = vld [vmem:[%s187 + $0x8] sm:$0xf]
        %v224 = vld [vmem:[%s187 + $0xc] sm:$0xf]
        %v225 = vld [vmem:[%s187 + $0x10] sm:$0xf]
        %v226 = vld [vmem:[%s187 + $0x14] sm:$0xf]
        %v227 = vld [vmem:[%s187 + $0x18] sm:$0xf]
        %v228 = vld [vmem:[%s187 + $0x1c] sm:$0xf]
        %v229 = vld [vmem:[%s187 + $0x20] sm:$0xf]
        %v230 = vld [vmem:[%s187 + $0x24] sm:$0xf]
        %v231 = vld [vmem:[%s187 + $0x28] sm:$0xf]
        %v232 = vld [vmem:[%s187 + $0x2c] sm:$0xf]
        %v233 = vld [vmem:[%s187 + $0x30] sm:$0xf]
        %v234 = vld [vmem:[%s187 + $0x34] sm:$0xf]
        %v235 = vld [vmem:[%s187 + $0x38] sm:$0xf]
        %v236 = vld [vmem:[%s187 + $0x3c] sm:$0xf]
        %v237 = vld [vmem:[#allocation5] sm:$0xf]
        %v238 = vld [vmem:[#allocation5 + $0x4] sm:$0xf]
        %v239 = vld [vmem:[#allocation5 + $0x8] sm:$0xf]
        %v240 = vld [vmem:[#allocation5 + $0xc] sm:$0xf]
        %v241 = vld [vmem:[#allocation5 + $0x10] sm:$0xf]
        %v242 = vld [vmem:[#allocation5 + $0x14] sm:$0xf]
        %v243 = vld [vmem:[#allocation5 + $0x18] sm:$0xf]
        %v244 = vld [vmem:[#allocation5 + $0x1c] sm:$0xf]
        %v245 = vld [vmem:[#allocation5 + $0x20] sm:$0xf]
        %v246 = vld [vmem:[#allocation5 + $0x24] sm:$0xf]
        %v247 = vld [vmem:[#allocation5 + $0x28] sm:$0xf]
        %v248 = vld [vmem:[#allocation5 + $0x2c] sm:$0xf]
        %v249 = vld [vmem:[#allocation5 + $0x30] sm:$0xf]
        %v250 = vld [vmem:[#allocation5 + $0x34] sm:$0xf]
        %v251 = vld [vmem:[#allocation5 + $0x38] sm:$0xf]
        %v252 = vld [vmem:[#allocation5 + $0x3c] sm:$0xf]
        %v253 = vld [vmem:[#allocation5 + $0x40] sm:$0xf]
        %v254 = vld [vmem:[#allocation5 + $0x44] sm:$0xf]
        %v255 = vld [vmem:[#allocation5 + $0x48] sm:$0xf]
        %v256 = vld [vmem:[#allocation5 + $0x4c] sm:$0xf]
        %v257 = vld [vmem:[#allocation5 + $0x50] sm:$0xf]
        %v258 = vld [vmem:[#allocation5 + $0x54] sm:$0xf]
        %v259 = vld [vmem:[#allocation5 + $0x58] sm:$0xf]
        %v260 = vld [vmem:[#allocation5 + $0x5c] sm:$0xf]
        %v261 = vld [vmem:[#allocation5 + $0x60] sm:$0xf]
        %v262 = vld [vmem:[#allocation5 + $0x64] sm:$0xf]
        %v263 = vld [vmem:[#allocation5 + $0x68] sm:$0xf]
        %v264 = vld [vmem:[#allocation5 + $0x6c] sm:$0xf]
        %v265 = vld [vmem:[#allocation5 + $0x70] sm:$0xf]
        %v266 = vld [vmem:[#allocation5 + $0x74] sm:$0xf]
        %v267 = vld [vmem:[#allocation5 + $0x78] sm:$0xf]
        %v268 = vld [vmem:[#allocation5 + $0x7c] sm:$0xf]
        %v269 = vld [vmem:[#allocation7] sm:$0xf]
        %v270 = vld [vmem:[#allocation7 + $0x4] sm:$0xf]
        %v271 = vld [vmem:[#allocation7 + $0x8] sm:$0xf]
        %v272 = vld [vmem:[#allocation7 + $0xc] sm:$0xf]
        %v273 = vld [vmem:[#allocation7 + $0x10] sm:$0xf]
        %v274 = vld [vmem:[#allocation7 + $0x14] sm:$0xf]
        %v275 = vld [vmem:[#allocation7 + $0x18] sm:$0xf]
        %v276 = vld [vmem:[#allocation7 + $0x1c] sm:$0xf]
        %v277 = vld [vmem:[#allocation7 + $0x20] sm:$0xf]
        %v278 = vld [vmem:[#allocation7 + $0x24] sm:$0xf]
        %v279 = vld [vmem:[#allocation7 + $0x28] sm:$0xf]
        %v280 = vld [vmem:[#allocation7 + $0x2c] sm:$0xf]
        %v281 = vld [vmem:[#allocation7 + $0x30] sm:$0xf]
        %v282 = vld [vmem:[#allocation7 + $0x34] sm:$0xf]
        %v283 = vld [vmem:[#allocation7 + $0x38] sm:$0xf]
        %v284 = vld [vmem:[#allocation7 + $0x3c] sm:$0xf]
        %v285 = vld [vmem:[#allocation7 + $0x40] sm:$0xf]
        %v286 = vld [vmem:[#allocation7 + $0x44] sm:$0xf]
        %v287 = vld [vmem:[#allocation7 + $0x48] sm:$0xf]
        %v288 = vld [vmem:[#allocation7 + $0x4c] sm:$0xf]
        %v289 = vld [vmem:[#allocation7 + $0x50] sm:$0xf]
        %v290 = vld [vmem:[#allocation7 + $0x54] sm:$0xf]
        %v291 = vld [vmem:[#allocation7 + $0x58] sm:$0xf]
        %v292 = vld [vmem:[#allocation7 + $0x5c] sm:$0xf]
        %v293 = vld [vmem:[#allocation7 + $0x60] sm:$0xf]
        %v294 = vld [vmem:[#allocation7 + $0x64] sm:$0xf]
        %v295 = vld [vmem:[#allocation7 + $0x68] sm:$0xf]
        %v296 = vld [vmem:[#allocation7 + $0x6c] sm:$0xf]
        %v297 = vld [vmem:[#allocation7 + $0x70] sm:$0xf]
        %v298 = vld [vmem:[#allocation7 + $0x74] sm:$0xf]
        %v299 = vld [vmem:[#allocation7 + $0x78] sm:$0xf]
        %v300 = vld [vmem:[#allocation7 + $0x7c] sm:$0xf]
        %v317 = vunpack.c.l.b16 %v221
        %v318 = vunpack.c.l.b16 %v222
        %v319 = vunpack.c.l.b16 %v223
        %v320 = vunpack.c.l.b16 %v224
        %v321 = vunpack.c.l.b16 %v225
        %v322 = vunpack.c.l.b16 %v226
        %v323 = vunpack.c.l.b16 %v227
        %v324 = vunpack.c.l.b16 %v228
        %v325 = vunpack.c.l.b16 %v229
        %v326 = vunpack.c.l.b16 %v230
        %v327 = vunpack.c.l.b16 %v231
        %v328 = vunpack.c.l.b16 %v232
        %v329 = vunpack.c.l.b16 %v233
        %v330 = vunpack.c.l.b16 %v234
        %v331 = vunpack.c.l.b16 %v235
        %v332 = vunpack.c.l.b16 %v236
        %v333 = vpack.c.b16 %v318, %v317
        %v334 = vpack.c.b16 %v320, %v319
        %v335 = vpack.c.b16 %v322, %v321
        %v336 = vpack.c.b16 %v324, %v323
        %v337 = vpack.c.b16 %v326, %v325
        %v338 = vpack.c.b16 %v328, %v327
        %v339 = vpack.c.b16 %v330, %v329
        %v340 = vpack.c.b16 %v332, %v331
        %v381 = vunpack.c.l.b16 %v237
        %v382 = vunpack.c.l.b16 %v238
        %v383 = vunpack.c.l.b16 %v239
        %v384 = vunpack.c.l.b16 %v240
        %v385 = vunpack.c.l.b16 %v241
        %v386 = vunpack.c.l.b16 %v242
        %v387 = vunpack.c.l.b16 %v243
        %v388 = vunpack.c.l.b16 %v244
        %v389 = vunpack.c.l.b16 %v245
        %v390 = vunpack.c.l.b16 %v246
        %v391 = vunpack.c.l.b16 %v247
        %v392 = vunpack.c.l.b16 %v248
        %v393 = vunpack.c.l.b16 %v249
        %v394 = vunpack.c.l.b16 %v250
        %v395 = vunpack.c.l.b16 %v251
        %v396 = vunpack.c.l.b16 %v252
        %v397 = vunpack.c.l.b16 %v253
        %v398 = vunpack.c.l.b16 %v254
        %v399 = vunpack.c.l.b16 %v255
        %v400 = vunpack.c.l.b16 %v256
        %v401 = vunpack.c.l.b16 %v257
        %v402 = vunpack.c.l.b16 %v258
        %v403 = vunpack.c.l.b16 %v259
        %v404 = vunpack.c.l.b16 %v260
        %v405 = vunpack.c.l.b16 %v261
        %v406 = vunpack.c.l.b16 %v262
        %v407 = vunpack.c.l.b16 %v263
        %v408 = vunpack.c.l.b16 %v264
        %v409 = vunpack.c.l.b16 %v265
        %v410 = vunpack.c.l.b16 %v266
        %v411 = vunpack.c.l.b16 %v267
        %v412 = vunpack.c.l.b16 %v268
        %v413 = vpack.c.b16 %v382, %v381
        %v414 = vpack.c.b16 %v384, %v383
        %v415 = vpack.c.b16 %v386, %v385
        %v416 = vpack.c.b16 %v388, %v387
        %v417 = vpack.c.b16 %v390, %v389
        %v418 = vpack.c.b16 %v392, %v391
        %v419 = vpack.c.b16 %v394, %v393
        %v420 = vpack.c.b16 %v396, %v395
        %v421 = vpack.c.b16 %v398, %v397
        %v422 = vpack.c.b16 %v400, %v399
        %v423 = vpack.c.b16 %v402, %v401
        %v424 = vpack.c.b16 %v404, %v403
        %v425 = vpack.c.b16 %v406, %v405
        %v426 = vpack.c.b16 %v408, %v407
        %v427 = vpack.c.b16 %v410, %v409
        %v428 = vpack.c.b16 %v412, %v411
        %445 = vmatprep.subr.bf16.mxu0 0
        %446 = vmatpush1.bf16.xpose.msra.mxu0 %v420
        %447 = vmatprep.subr.bf16.mxu0 0
        %448 = vmatpush1.bf16.xpose.msra.mxu0 %v419
        %449 = vmatprep.subr.bf16.mxu0 0
        %450 = vmatpush1.bf16.xpose.msra.mxu0 %v418
        %451 = vmatprep.subr.bf16.mxu0 0
        %452 = vmatpush1.bf16.xpose.msra.mxu0 %v417
        %453 = vmatprep.subr.bf16.mxu0 0
        %454 = vmatpush1.bf16.xpose.msra.mxu0 %v416
        %455 = vmatprep.subr.bf16.mxu0 0
        %456 = vmatpush1.bf16.xpose.msra.mxu0 %v415
        %457 = vmatprep.subr.bf16.mxu0 0
        %458 = vmatpush1.bf16.xpose.msra.mxu0 %v414
        %459 = vmatprep.subr.bf16.mxu0 0
        %460 = vmatpush1.bf16.xpose.msra.mxu0 %v413
        %461 = vmatprep.subr.bf16.mxu0 0
        %462 = vmatpush2.bf16.xpose.msra.mxu0 %v428
        %463 = vmatprep.subr.bf16.mxu0 0
        %464 = vmatpush2.bf16.xpose.msra.mxu0 %v427
        %465 = vmatprep.subr.bf16.mxu0 0
        %466 = vmatpush2.bf16.xpose.msra.mxu0 %v426
        %467 = vmatprep.subr.bf16.mxu0 0
        %468 = vmatpush2.bf16.xpose.msra.mxu0 %v425
        %469 = vmatprep.subr.bf16.mxu0 0
        %470 = vmatpush2.bf16.xpose.msra.mxu0 %v424
        %471 = vmatprep.subr.bf16.mxu0 0
        %472 = vmatpush2.bf16.xpose.msra.mxu0 %v423
        %473 = vmatprep.subr.bf16.mxu0 0
        %474 = vmatpush2.bf16.xpose.msra.mxu0 %v422
        %475 = vmatprep.subr.bf16.mxu0 0
        %476 = vmatpush2.bf16.xpose.msra.mxu0 %v421
        %477 = vmatprep.mubr.bf16.mxu0 0
        %478 = vmatmul.mubr.bf16.gmra.mxu0 %v333
        %v479 = vpop.f32.mrf.mxu0
        %v480 = vadd.f32 0.0, %v479
        %v481 = vpop.f32.mrf.mxu0
        %v482 = vadd.f32 0.0, %v481
        %v483 = vpop.f32.mrf.mxu0
        %v484 = vadd.f32 0.0, %v483
        %v485 = vpop.f32.mrf.mxu0
        %v486 = vadd.f32 0.0, %v485
        %487 = vmatprep.mubr.bf16.mxu0 0
        %488 = vmatmul.mubr.bf16.gmra.mxu0 %v334
        %v489 = vpop.f32.mrf.mxu0
        %v490 = vadd.f32 0.0, %v489
        %v491 = vpop.f32.mrf.mxu0
        %v492 = vadd.f32 0.0, %v491
        %v493 = vpop.f32.mrf.mxu0
        %v494 = vadd.f32 0.0, %v493
        %v495 = vpop.f32.mrf.mxu0
        %v496 = vadd.f32 0.0, %v495
        %497 = vmatprep.mubr.bf16.mxu0 0
        %498 = vmatmul.mubr.bf16.gmra.mxu0 %v335
        %v499 = vpop.f32.mrf.mxu0
        %v500 = vadd.f32 0.0, %v499
        %v501 = vpop.f32.mrf.mxu0
        %v502 = vadd.f32 0.0, %v501
        %v503 = vpop.f32.mrf.mxu0
        %v504 = vadd.f32 0.0, %v503
        %v505 = vpop.f32.mrf.mxu0
        %v506 = vadd.f32 0.0, %v505
        %507 = vmatprep.mubr.bf16.mxu0 0
        %508 = vmatmul.mubr.bf16.gmra.mxu0 %v336
        %v509 = vpop.f32.mrf.mxu0
        %v510 = vadd.f32 0.0, %v509
        %v511 = vpop.f32.mrf.mxu0
        %v512 = vadd.f32 0.0, %v511
        %v513 = vpop.f32.mrf.mxu0
        %v514 = vadd.f32 0.0, %v513
        %v515 = vpop.f32.mrf.mxu0
        %v516 = vadd.f32 0.0, %v515
        %517 = vmatprep.mubr.bf16.mxu0 0
        %518 = vmatmul.mubr.bf16.gmra.mxu0 %v337
        %v519 = vpop.f32.mrf.mxu0
        %v520 = vadd.f32 0.0, %v519
        %v521 = vpop.f32.mrf.mxu0
        %v522 = vadd.f32 0.0, %v521
        %v523 = vpop.f32.mrf.mxu0
        %v524 = vadd.f32 0.0, %v523
        %v525 = vpop.f32.mrf.mxu0
        %v526 = vadd.f32 0.0, %v525
        %527 = vmatprep.mubr.bf16.mxu0 0
        %528 = vmatmul.mubr.bf16.gmra.mxu0 %v338
        %v529 = vpop.f32.mrf.mxu0
        %v530 = vadd.f32 0.0, %v529
        %v531 = vpop.f32.mrf.mxu0
        %v532 = vadd.f32 0.0, %v531
        %v533 = vpop.f32.mrf.mxu0
        %v534 = vadd.f32 0.0, %v533
        %v535 = vpop.f32.mrf.mxu0
        %v536 = vadd.f32 0.0, %v535
        %537 = vmatprep.mubr.bf16.mxu0 0
        %538 = vmatmul.mubr.bf16.gmra.mxu0 %v339
        %v539 = vpop.f32.mrf.mxu0
        %v540 = vadd.f32 0.0, %v539
        %v541 = vpop.f32.mrf.mxu0
        %v542 = vadd.f32 0.0, %v541
        %v543 = vpop.f32.mrf.mxu0
        %v544 = vadd.f32 0.0, %v543
        %v545 = vpop.f32.mrf.mxu0
        %v546 = vadd.f32 0.0, %v545
        %547 = vmatprep.mubr.bf16.mxu0 0
        %548 = vmatmul.mubr.bf16.gmra.mxu0 %v340
        %v549 = vpop.f32.mrf.mxu0
        %v550 = vadd.f32 0.0, %v549
        %v551 = vpop.f32.mrf.mxu0
        %v552 = vadd.f32 0.0, %v551
        %v553 = vpop.f32.mrf.mxu0
        %v554 = vadd.f32 0.0, %v553
        %v555 = vpop.f32.mrf.mxu0
        %v556 = vadd.f32 0.0, %v555
        %557 = vdwg.mxu0
        %v558 = vmax.f32 %v480, %v482
        %559 = vmax.xlane.f32.xlu0 %v558
        %v560 = vpop.xlane.xlu0 %559
        %v561 = vmax.f32 %v484, %v486
        %562 = vmax.xlane.f32.xlu0 %v561
        %v563 = vpop.xlane.xlu0 %562
        %v564 = vmax.f32 %v490, %v492
        %565 = vmax.xlane.f32.xlu0 %v564
        %v566 = vpop.xlane.xlu0 %565
        %v567 = vmax.f32 %v494, %v496
        %568 = vmax.xlane.f32.xlu0 %v567
        %v569 = vpop.xlane.xlu0 %568
        %v570 = vmax.f32 %v500, %v502
        %571 = vmax.xlane.f32.xlu0 %v570
        %v572 = vpop.xlane.xlu0 %571
        %v573 = vmax.f32 %v504, %v506
        %574 = vmax.xlane.f32.xlu0 %v573
        %v575 = vpop.xlane.xlu0 %574
        %v576 = vmax.f32 %v510, %v512
        %577 = vmax.xlane.f32.xlu0 %v576
        %v578 = vpop.xlane.xlu0 %577
        %v579 = vmax.f32 %v514, %v516
        %580 = vmax.xlane.f32.xlu0 %v579
        %v581 = vpop.xlane.xlu0 %580
        %v582 = vmax.f32 %v520, %v522
        %583 = vmax.xlane.f32.xlu0 %v582
        %v584 = vpop.xlane.xlu0 %583
        %v585 = vmax.f32 %v524, %v526
        %586 = vmax.xlane.f32.xlu0 %v585
        %v587 = vpop.xlane.xlu0 %586
        %v588 = vmax.f32 %v530, %v532
        %589 = vmax.xlane.f32.xlu0 %v588
        %v590 = vpop.xlane.xlu0 %589
        %v591 = vmax.f32 %v534, %v536
        %592 = vmax.xlane.f32.xlu0 %v591
        %v593 = vpop.xlane.xlu0 %592
        %v594 = vmax.f32 %v540, %v542
        %595 = vmax.xlane.f32.xlu0 %v594
        %v596 = vpop.xlane.xlu0 %595
        %v597 = vmax.f32 %v544, %v546
        %598 = vmax.xlane.f32.xlu0 %v597
        %v599 = vpop.xlane.xlu0 %598
        %v600 = vmax.f32 %v550, %v552
        %601 = vmax.xlane.f32.xlu0 %v600
        %v602 = vpop.xlane.xlu0 %601
        %v603 = vmax.f32 %v554, %v556
        %604 = vmax.xlane.f32.xlu0 %v603
        %v605 = vpop.xlane.xlu0 %604
        %v606 = vsub.f32 -inf, %v560
        %v607 = vsub.f32 -inf, %v563
        %v608 = vsub.f32 -inf, %v566
        %v609 = vsub.f32 -inf, %v569
        %v610 = vsub.f32 -inf, %v572
        %v611 = vsub.f32 -inf, %v575
        %v612 = vsub.f32 -inf, %v578
        %v613 = vsub.f32 -inf, %v581
        %v614 = vsub.f32 -inf, %v584
        %v615 = vsub.f32 -inf, %v587
        %v616 = vsub.f32 -inf, %v590
        %v617 = vsub.f32 -inf, %v593
        %v618 = vsub.f32 -inf, %v596
        %v619 = vsub.f32 -inf, %v599
        %v620 = vsub.f32 -inf, %v602
        %v621 = vsub.f32 -inf, %v605
        %v622 = vmul.f32 %v606, 1.442695
        %v623 = vpow.pop %v622
        %v624 = vmul.f32 %v607, 1.442695
        %v625 = vpow.pop %v624
        %v626 = vmul.f32 %v608, 1.442695
        %v627 = vpow.pop %v626
        %v628 = vmul.f32 %v609, 1.442695
        %v629 = vpow.pop %v628
        %v630 = vmul.f32 %v610, 1.442695
        %v631 = vpow.pop %v630
        %v632 = vmul.f32 %v611, 1.442695
        %v633 = vpow.pop %v632
        %v634 = vmul.f32 %v612, 1.442695
        %v635 = vpow.pop %v634
        %v636 = vmul.f32 %v613, 1.442695
        %v637 = vpow.pop %v636
        %v638 = vmul.f32 %v614, 1.442695
        %v639 = vpow.pop %v638
        %v640 = vmul.f32 %v615, 1.442695
        %v641 = vpow.pop %v640
        %v642 = vmul.f32 %v616, 1.442695
        %v643 = vpow.pop %v642
        %v644 = vmul.f32 %v617, 1.442695
        %v645 = vpow.pop %v644
        %v646 = vmul.f32 %v618, 1.442695
        %v647 = vpow.pop %v646
        %v648 = vmul.f32 %v619, 1.442695
        %v649 = vpow.pop %v648
        %v650 = vmul.f32 %v620, 1.442695
        %v651 = vpow.pop %v650
        %v652 = vmul.f32 %v621, 1.442695
        %v653 = vpow.pop %v652
        %v654 = vsub.f32 %v480, %v560
        %v655 = vsub.f32 %v482, %v560
        %v656 = vsub.f32 %v484, %v563
        %v657 = vsub.f32 %v486, %v563
        %v658 = vsub.f32 %v490, %v566
        %v659 = vsub.f32 %v492, %v566
        %v660 = vsub.f32 %v494, %v569
        %v661 = vsub.f32 %v496, %v569
        %v662 = vsub.f32 %v500, %v572
        %v663 = vsub.f32 %v502, %v572
        %v664 = vsub.f32 %v504, %v575
        %v665 = vsub.f32 %v506, %v575
        %v666 = vsub.f32 %v510, %v578
        %v667 = vsub.f32 %v512, %v578
        %v668 = vsub.f32 %v514, %v581
        %v669 = vsub.f32 %v516, %v581
        %v670 = vsub.f32 %v520, %v584
        %v671 = vsub.f32 %v522, %v584
        %v672 = vsub.f32 %v524, %v587
        %v673 = vsub.f32 %v526, %v587
        %v674 = vsub.f32 %v530, %v590
        %v675 = vsub.f32 %v532, %v590
        %v676 = vsub.f32 %v534, %v593
        %v677 = vsub.f32 %v536, %v593
        %v678 = vsub.f32 %v540, %v596
        %v679 = vsub.f32 %v542, %v596
        %v680 = vsub.f32 %v544, %v599
        %v681 = vsub.f32 %v546, %v599
        %v682 = vsub.f32 %v550, %v602
        %v683 = vsub.f32 %v552, %v602
        %v684 = vsub.f32 %v554, %v605
        %v685 = vsub.f32 %v556, %v605
        %v686 = vmul.f32 %v654, 1.442695
        %v687 = vpow.pop %v686
        %v688 = vmul.f32 %v655, 1.442695
        %v689 = vpow.pop %v688
        %v690 = vmul.f32 %v656, 1.442695
        %v691 = vpow.pop %v690
        %v692 = vmul.f32 %v657, 1.442695
        %v693 = vpow.pop %v692
        %v694 = vmul.f32 %v658, 1.442695
        %v695 = vpow.pop %v694
        %v696 = vmul.f32 %v659, 1.442695
        %v697 = vpow.pop %v696
        %v698 = vmul.f32 %v660, 1.442695
        %v699 = vpow.pop %v698
        %v700 = vmul.f32 %v661, 1.442695
        %v701 = vpow.pop %v700
        %v702 = vmul.f32 %v662, 1.442695
        %v703 = vpow.pop %v702
        %v704 = vmul.f32 %v663, 1.442695
        %v705 = vpow.pop %v704
        %v706 = vmul.f32 %v664, 1.442695
        %v707 = vpow.pop %v706
        %v708 = vmul.f32 %v665, 1.442695
        %v709 = vpow.pop %v708
        %v710 = vmul.f32 %v666, 1.442695
        %v711 = vpow.pop %v710
        %v712 = vmul.f32 %v667, 1.442695
        %v713 = vpow.pop %v712
        %v714 = vmul.f32 %v668, 1.442695
        %v715 = vpow.pop %v714
        %v716 = vmul.f32 %v669, 1.442695
        %v717 = vpow.pop %v716
        %v718 = vmul.f32 %v670, 1.442695
        %v719 = vpow.pop %v718
        %v720 = vmul.f32 %v671, 1.442695
        %v721 = vpow.pop %v720
        %v722 = vmul.f32 %v672, 1.442695
        %v723 = vpow.pop %v722
        %v724 = vmul.f32 %v673, 1.442695
        %v725 = vpow.pop %v724
        %v726 = vmul.f32 %v674, 1.442695
        %v727 = vpow.pop %v726
        %v728 = vmul.f32 %v675, 1.442695
        %v729 = vpow.pop %v728
        %v730 = vmul.f32 %v676, 1.442695
        %v731 = vpow.pop %v730
        %v732 = vmul.f32 %v677, 1.442695
        %v733 = vpow.pop %v732
        %v734 = vmul.f32 %v678, 1.442695
        %v735 = vpow.pop %v734
        %v736 = vmul.f32 %v679, 1.442695
        %v737 = vpow.pop %v736
        %v738 = vmul.f32 %v680, 1.442695
        %v739 = vpow.pop %v738
        %v740 = vmul.f32 %v681, 1.442695
        %v741 = vpow.pop %v740
        %v742 = vmul.f32 %v682, 1.442695
        %v743 = vpow.pop %v742
        %v744 = vmul.f32 %v683, 1.442695
        %v745 = vpow.pop %v744
        %v746 = vmul.f32 %v684, 1.442695
        %v747 = vpow.pop %v746
        %v748 = vmul.f32 %v685, 1.442695
        %v749 = vpow.pop %v748
        %v750 = vmul.f32 %v623, 0.0
        %v751 = vmul.f32 %v625, 0.0
        %v752 = vmul.f32 %v627, 0.0
        %v753 = vmul.f32 %v629, 0.0
        %v754 = vmul.f32 %v631, 0.0
        %v755 = vmul.f32 %v633, 0.0
        %v756 = vmul.f32 %v635, 0.0
        %v757 = vmul.f32 %v637, 0.0
        %v758 = vmul.f32 %v639, 0.0
        %v759 = vmul.f32 %v641, 0.0
        %v760 = vmul.f32 %v643, 0.0
        %v761 = vmul.f32 %v645, 0.0
        %v762 = vmul.f32 %v647, 0.0
        %v763 = vmul.f32 %v649, 0.0
        %v764 = vmul.f32 %v651, 0.0
        %v765 = vmul.f32 %v653, 0.0
        %v766 = vadd.f32 %v687, %v689
        %767 = vadd.xlane.f32.xlu0 %v766
        %v768 = vpop.xlane.xlu0 %767
        %v769 = vadd.f32 %v691, %v693
        %770 = vadd.xlane.f32.xlu0 %v769
        %v771 = vpop.xlane.xlu0 %770
        %v772 = vadd.f32 %v695, %v697
        %773 = vadd.xlane.f32.xlu0 %v772
        %v774 = vpop.xlane.xlu0 %773
        %v775 = vadd.f32 %v699, %v701
        %776 = vadd.xlane.f32.xlu0 %v775
        %v777 = vpop.xlane.xlu0 %776
        %v778 = vadd.f32 %v703, %v705
        %779 = vadd.xlane.f32.xlu0 %v778
        %v780 = vpop.xlane.xlu0 %779
        %v781 = vadd.f32 %v707, %v709
        %782 = vadd.xlane.f32.xlu0 %v781
        %v783 = vpop.xlane.xlu0 %782
        %v784 = vadd.f32 %v711, %v713
        %785 = vadd.xlane.f32.xlu0 %v784
        %v786 = vpop.xlane.xlu0 %785
        %v787 = vadd.f32 %v715, %v717
        %788 = vadd.xlane.f32.xlu0 %v787
        %v789 = vpop.xlane.xlu0 %788
        %v790 = vadd.f32 %v719, %v721
        %791 = vadd.xlane.f32.xlu0 %v790
        %v792 = vpop.xlane.xlu0 %791
        %v793 = vadd.f32 %v723, %v725
        %794 = vadd.xlane.f32.xlu0 %v793
        %v795 = vpop.xlane.xlu0 %794
        %v796 = vadd.f32 %v727, %v729
        %797 = vadd.xlane.f32.xlu0 %v796
        %v798 = vpop.xlane.xlu0 %797
        %v799 = vadd.f32 %v731, %v733
        %800 = vadd.xlane.f32.xlu0 %v799
        %v801 = vpop.xlane.xlu0 %800
        %v802 = vadd.f32 %v735, %v737
        %803 = vadd.xlane.f32.xlu0 %v802
        %v804 = vpop.xlane.xlu0 %803
        %v805 = vadd.f32 %v739, %v741
        %806 = vadd.xlane.f32.xlu0 %v805
        %v807 = vpop.xlane.xlu0 %806
        %v808 = vadd.f32 %v743, %v745
        %809 = vadd.xlane.f32.xlu0 %v808
        %v810 = vpop.xlane.xlu0 %809
        %v811 = vadd.f32 %v747, %v749
        %812 = vadd.xlane.f32.xlu0 %v811
        %v813 = vpop.xlane.xlu0 %812
        %v814 = vadd.f32 %v750, %v768
        %v815 = vadd.f32 %v751, %v771
        %v816 = vadd.f32 %v752, %v774
        %v817 = vadd.f32 %v753, %v777
        %v818 = vadd.f32 %v754, %v780
        %v819 = vadd.f32 %v755, %v783
        %v820 = vadd.f32 %v756, %v786
        %v821 = vadd.f32 %v757, %v789
        %v822 = vadd.f32 %v758, %v792
        %v823 = vadd.f32 %v759, %v795
        %v824 = vadd.f32 %v760, %v798
        %v825 = vadd.f32 %v761, %v801
        %v826 = vadd.f32 %v762, %v804
        %v827 = vadd.f32 %v763, %v807
        %v828 = vadd.f32 %v764, %v810
        %v829 = vadd.f32 %v765, %v813
        %v830 = vpack.c.bf16 %v691, %v687
        %v831 = vpack.c.bf16 %v693, %v689
        %v832 = vpack.c.bf16 %v699, %v695
        %v833 = vpack.c.bf16 %v701, %v697
        %v834 = vpack.c.bf16 %v707, %v703
        %v835 = vpack.c.bf16 %v709, %v705
        %v836 = vpack.c.bf16 %v715, %v711
        %v837 = vpack.c.bf16 %v717, %v713
        %v838 = vpack.c.bf16 %v723, %v719
        %v839 = vpack.c.bf16 %v725, %v721
        %v840 = vpack.c.bf16 %v731, %v727
        %v841 = vpack.c.bf16 %v733, %v729
        %v842 = vpack.c.bf16 %v739, %v735
        %v843 = vpack.c.bf16 %v741, %v737
        %v844 = vpack.c.bf16 %v747, %v743
        %v845 = vpack.c.bf16 %v749, %v745
        %v878 = vunpack.c.l.b16 %v269
        %v879 = vunpack.c.l.b16 %v270
        %v880 = vunpack.c.l.b16 %v271
        %v881 = vunpack.c.l.b16 %v272
        %v882 = vunpack.c.l.b16 %v273
        %v883 = vunpack.c.l.b16 %v274
        %v884 = vunpack.c.l.b16 %v275
        %v885 = vunpack.c.l.b16 %v276
        %v886 = vunpack.c.l.b16 %v277
        %v887 = vunpack.c.l.b16 %v278
        %v888 = vunpack.c.l.b16 %v279
        %v889 = vunpack.c.l.b16 %v280
        %v890 = vunpack.c.l.b16 %v281
        %v891 = vunpack.c.l.b16 %v282
        %v892 = vunpack.c.l.b16 %v283
        %v893 = vunpack.c.l.b16 %v284
        %v894 = vunpack.c.l.b16 %v285
        %v895 = vunpack.c.l.b16 %v286
        %v896 = vunpack.c.l.b16 %v287
        %v897 = vunpack.c.l.b16 %v288
        %v898 = vunpack.c.l.b16 %v289
        %v899 = vunpack.c.l.b16 %v290
        %v900 = vunpack.c.l.b16 %v291
        %v901 = vunpack.c.l.b16 %v292
        %v902 = vunpack.c.l.b16 %v293
        %v903 = vunpack.c.l.b16 %v294
        %v904 = vunpack.c.l.b16 %v295
        %v905 = vunpack.c.l.b16 %v296
        %v906 = vunpack.c.l.b16 %v297
        %v907 = vunpack.c.l.b16 %v298
        %v908 = vunpack.c.l.b16 %v299
        %v909 = vunpack.c.l.b16 %v300
        %v910 = vpack.c.b16 %v879, %v878
        %v911 = vpack.c.b16 %v881, %v880
        %v912 = vpack.c.b16 %v883, %v882
        %v913 = vpack.c.b16 %v885, %v884
        %v914 = vpack.c.b16 %v887, %v886
        %v915 = vpack.c.b16 %v889, %v888
        %v916 = vpack.c.b16 %v891, %v890
        %v917 = vpack.c.b16 %v893, %v892
        %v918 = vpack.c.b16 %v895, %v894
        %v919 = vpack.c.b16 %v897, %v896
        %v920 = vpack.c.b16 %v899, %v898
        %v921 = vpack.c.b16 %v901, %v900
        %v922 = vpack.c.b16 %v903, %v902
        %v923 = vpack.c.b16 %v905, %v904
        %v924 = vpack.c.b16 %v907, %v906
        %v925 = vpack.c.b16 %v909, %v908
        %942 = vmatprep.subr.bf16.mxu0 0
        %943 = vmatpush1.bf16.msra.mxu0 %v917
        %944 = vmatprep.subr.bf16.mxu0 0
        %945 = vmatpush1.bf16.msra.mxu0 %v916
        %946 = vmatprep.subr.bf16.mxu0 0
        %947 = vmatpush1.bf16.msra.mxu0 %v915
        %948 = vmatprep.subr.bf16.mxu0 0
        %949 = vmatpush1.bf16.msra.mxu0 %v914
        %950 = vmatprep.subr.bf16.mxu0 0
        %951 = vmatpush1.bf16.msra.mxu0 %v913
        %952 = vmatprep.subr.bf16.mxu0 0
        %953 = vmatpush1.bf16.msra.mxu0 %v912
        %954 = vmatprep.subr.bf16.mxu0 0
        %955 = vmatpush1.bf16.msra.mxu0 %v911
        %956 = vmatprep.subr.bf16.mxu0 0
        %957 = vmatpush1.bf16.msra.mxu0 %v910
        %958 = vmatprep.subr.bf16.mxu0 0
        %959 = vmatpush2.bf16.msra.mxu0 %v925
        %960 = vmatprep.subr.bf16.mxu0 0
        %961 = vmatpush2.bf16.msra.mxu0 %v924
        %962 = vmatprep.subr.bf16.mxu0 0
        %963 = vmatpush2.bf16.msra.mxu0 %v923
        %964 = vmatprep.subr.bf16.mxu0 0
        %965 = vmatpush2.bf16.msra.mxu0 %v922
        %966 = vmatprep.subr.bf16.mxu0 0
        %967 = vmatpush2.bf16.msra.mxu0 %v921
        %968 = vmatprep.subr.bf16.mxu0 0
        %969 = vmatpush2.bf16.msra.mxu0 %v920
        %970 = vmatprep.subr.bf16.mxu0 0
        %971 = vmatpush2.bf16.msra.mxu0 %v919
        %972 = vmatprep.subr.bf16.mxu0 0
        %973 = vmatpush2.bf16.msra.mxu0 %v918
        %974 = vmatprep.mubr.bf16.mxu0 %v831
        %975 = vmatmul.mubr.bf16.gmra.mxu0 %v830
        %v976 = vpop.f32.mrf.mxu0
        %v977 = vadd.f32 0.0, %v976
        %v978 = vpop.f32.mrf.mxu0
        %v979 = vpop.f32.mrf.mxu0
        %v980 = vadd.f32 0.0, %v979
        %v981 = vpop.f32.mrf.mxu0
        %982 = vmatprep.mubr.bf16.mxu0 %v833
        %983 = vmatmul.mubr.bf16.gmra.mxu0 %v832
        %v984 = vpop.f32.mrf.mxu0
        %v985 = vadd.f32 0.0, %v984
        %v986 = vpop.f32.mrf.mxu0
        %v987 = vpop.f32.mrf.mxu0
        %v988 = vadd.f32 0.0, %v987
        %v989 = vpop.f32.mrf.mxu0
        %990 = vmatprep.mubr.bf16.mxu0 %v835
        %991 = vmatmul.mubr.bf16.gmra.mxu0 %v834
        %v992 = vpop.f32.mrf.mxu0
        %v993 = vadd.f32 0.0, %v992
        %v994 = vpop.f32.mrf.mxu0
        %v995 = vpop.f32.mrf.mxu0
        %v996 = vadd.f32 0.0, %v995
        %v997 = vpop.f32.mrf.mxu0
        %998 = vmatprep.mubr.bf16.mxu0 %v837
        %999 = vmatmul.mubr.bf16.gmra.mxu0 %v836
        %v1000 = vpop.f32.mrf.mxu0
        %v1001 = vadd.f32 0.0, %v1000
        %v1002 = vpop.f32.mrf.mxu0
        %v1003 = vpop.f32.mrf.mxu0
        %v1004 = vadd.f32 0.0, %v1003
        %v1005 = vpop.f32.mrf.mxu0
        %1006 = vmatprep.mubr.bf16.mxu0 %v839
        %1007 = vmatmul.mubr.bf16.gmra.mxu0 %v838
        %v1008 = vpop.f32.mrf.mxu0
        %v1009 = vadd.f32 0.0, %v1008
        %v1010 = vpop.f32.mrf.mxu0
        %v1011 = vpop.f32.mrf.mxu0
        %v1012 = vadd.f32 0.0, %v1011
        %v1013 = vpop.f32.mrf.mxu0
        %1014 = vmatprep.mubr.bf16.mxu0 %v841
        %1015 = vmatmul.mubr.bf16.gmra.mxu0 %v840
        %v1016 = vpop.f32.mrf.mxu0
        %v1017 = vadd.f32 0.0, %v1016
        %v1018 = vpop.f32.mrf.mxu0
        %v1019 = vpop.f32.mrf.mxu0
        %v1020 = vadd.f32 0.0, %v1019
        %v1021 = vpop.f32.mrf.mxu0
        %1022 = vmatprep.mubr.bf16.mxu0 %v843
        %1023 = vmatmul.mubr.bf16.gmra.mxu0 %v842
        %v1024 = vpop.f32.mrf.mxu0
        %v1025 = vadd.f32 0.0, %v1024
        %v1026 = vpop.f32.mrf.mxu0
        %v1027 = vpop.f32.mrf.mxu0
        %v1028 = vadd.f32 0.0, %v1027
        %v1029 = vpop.f32.mrf.mxu0
        %1030 = vmatprep.mubr.bf16.mxu0 %v845
        %1031 = vmatmul.mubr.bf16.gmra.mxu0 %v844
        %v1032 = vpop.f32.mrf.mxu0
        %v1033 = vadd.f32 0.0, %v1032
        %v1034 = vpop.f32.mrf.mxu0
        %v1035 = vpop.f32.mrf.mxu0
        %v1036 = vadd.f32 0.0, %v1035
        %v1037 = vpop.f32.mrf.mxu0
        %1038 = vdwg.mxu0
        %v1039 = vadd.f32 %v750, %v977
        %v1040 = vadd.f32 %v751, %v980
        %v1041 = vadd.f32 %v752, %v985
        %v1042 = vadd.f32 %v753, %v988
        %v1043 = vadd.f32 %v754, %v993
        %v1044 = vadd.f32 %v755, %v996
        %v1045 = vadd.f32 %v756, %v1001
        %v1046 = vadd.f32 %v757, %v1004
        %v1047 = vadd.f32 %v758, %v1009
        %v1048 = vadd.f32 %v759, %v1012
        %v1049 = vadd.f32 %v760, %v1017
        %v1050 = vadd.f32 %v761, %v1020
        %v1051 = vadd.f32 %v762, %v1025
        %v1052 = vadd.f32 %v763, %v1028
        %v1053 = vadd.f32 %v764, %v1033
        %v1054 = vadd.f32 %v765, %v1036
        %v1055 = vrcp.pop %v814
        %v1056 = vrcp.pop %v815
        %v1057 = vrcp.pop %v816
        %v1058 = vrcp.pop %v817
        %v1059 = vrcp.pop %v818
        %v1060 = vrcp.pop %v819
        %v1061 = vrcp.pop %v820
        %v1062 = vrcp.pop %v821
        %v1063 = vrcp.pop %v822
        %v1064 = vrcp.pop %v823
        %v1065 = vrcp.pop %v824
        %v1066 = vrcp.pop %v825
        %v1067 = vrcp.pop %v826
        %v1068 = vrcp.pop %v827
        %v1069 = vrcp.pop %v828
        %v1070 = vrcp.pop %v829
        %v1071 = vmul.f32 %v1039, %v1055
        %v1072 = vmul.f32 %v1040, %v1056
        %v1073 = vmul.f32 %v1041, %v1057
        %v1074 = vmul.f32 %v1042, %v1058
        %v1075 = vmul.f32 %v1043, %v1059
        %v1076 = vmul.f32 %v1044, %v1060
        %v1077 = vmul.f32 %v1045, %v1061
        %v1078 = vmul.f32 %v1046, %v1062
        %v1079 = vmul.f32 %v1047, %v1063
        %v1080 = vmul.f32 %v1048, %v1064
        %v1081 = vmul.f32 %v1049, %v1065
        %v1082 = vmul.f32 %v1050, %v1066
        %v1083 = vmul.f32 %v1051, %v1067
        %v1084 = vmul.f32 %v1052, %v1068
        %v1085 = vmul.f32 %v1053, %v1069
        %v1086 = vmul.f32 %v1054, %v1070
        %1087 = vst [vmem:[%s217] sm:$0xff] %v1071
        %1088 = vst [vmem:[%s217 + $0x8] sm:$0xff] %v1072
        %1089 = vst [vmem:[%s217 + $0x10] sm:$0xff] %v1073
        %1090 = vst [vmem:[%s217 + $0x18] sm:$0xff] %v1074
        %1091 = vst [vmem:[%s217 + $0x20] sm:$0xff] %v1075
        %1092 = vst [vmem:[%s217 + $0x28] sm:$0xff] %v1076
        %1093 = vst [vmem:[%s217 + $0x30] sm:$0xff] %v1077
        %1094 = vst [vmem:[%s217 + $0x38] sm:$0xff] %v1078
        %1095 = vst [vmem:[%s217 + $0x40] sm:$0xff] %v1079
        %1096 = vst [vmem:[%s217 + $0x48] sm:$0xff] %v1080
        %1097 = vst [vmem:[%s217 + $0x50] sm:$0xff] %v1081
        %1098 = vst [vmem:[%s217 + $0x58] sm:$0xff] %v1082
        %1099 = vst [vmem:[%s217 + $0x60] sm:$0xff] %v1083
        %1100 = vst [vmem:[%s217 + $0x68] sm:$0xff] %v1084
        %1101 = vst [vmem:[%s217 + $0x70] sm:$0xff] %v1085
        %1102 = vst [vmem:[%s217 + $0x78] sm:$0xff] %v1086
        %s1103 = sand.u32 %s97, 1
        %s1104 = scalar_lea.sflag [#allocation4], %s1103
        %s1105 = sand.u32 %s97, 1
        %s1106 = smul.addr %s1105, 128
        %s1107 = scalar_lea.vmem [#allocation8], %s1106
        // Predicated region
        $region45: #{tpu_custom_call.1} parent=31 // pred_check
          %p1108 = pneg %p107
        $region46: #{tpu_custom_call.1} parent=31 // pred_check_branch
          %1110 = sbr.rel (%p1108) target = $region48
        $region47: #{tpu_custom_call.1} parent=31 // pred_region
          %s1111 = smul.u32 16, %s21
          %s1113 = ssub.s32 2048, 2048
          %1114 = vsyncadd %s1104, %s1113
          %s1115 = smul.addr %s1111, 128
          %s1116 = scalar_lea.hbm %s3, %s1115
          %s1117 = sshll.u32 %s1107, 4
          %s1118 = int_to_ptr.vmem [resolvable:$true] %s1117
          %1123 = dma.vmem_to_hbm [thread:$0]  %s1118, 2048, %s1116, %s1104, 128, 128, 8
        $region48: #{tpu_custom_call.1} parent=31 // pred_fallthru
          _
      $region32: #{tpu_custom_call.1} parent=5 // pred_fallthru
        _
      %p1124 = scmp.le.s32.totalorder 2, %s16
      // Predicated region
      $region49: #{tpu_custom_call.1} parent=5 // pred_check
        %p1125 = pneg %p1124
      $region50: #{tpu_custom_call.1} parent=5 // pred_check_branch
        %1127 = sbr.rel (%p1125) target = $region52
      $region51: #{tpu_custom_call.1} parent=5 // pred_region
        %s1128 = ssub.s32 %s16, 2
        // Predicated region
        $region53: #{tpu_custom_call.1} parent=51 // pred_check
          %p1129 = pneg %p113
        $region54: #{tpu_custom_call.1} parent=51 // pred_check_branch
          %1131 = sbr.rel (%p1129) target = $region56
        $region55: #{tpu_custom_call.1} parent=51 // pred_region
          %s1132 = sand.u32 %s98, 1
          %s1133 = scalar_lea.sflag [#allocation4], %s1132
          %s1134 = sand.u32 %s98, 1
          %s1135 = smul.addr %s1134, 128
          %s1136 = scalar_lea.vmem [#allocation8], %s1135
          %1137 = dma.done %s1133, 2048
        $region56: #{tpu_custom_call.1} parent=51 // pred_fallthru
          _
      $region52: #{tpu_custom_call.1} parent=5 // pred_fallthru
        _
    $region6: #{tpu_custom_call.1} parent=1 // loop_footer
      %s20 = sadd.s32 1, %s16
    $region7: #{tpu_custom_call.1} parent=1 // loop_footer_branch
      %15 = sbr.rel target = $region3
    $region8: #{tpu_custom_call.1} parent=1 // loop_exit
      _
    %1138 = vsyncpa [#allocation3], 1
    %s1139 = scalar_lea.sflag [#allocation3], 1
    %1140 = vsyncpa %s1139, 1
    %1141 = vsyncpa [#allocation6], 1
    %1142 = vsyncpa [#allocation4], 1
    %s1143 = scalar_lea.sflag [#allocation4], 1
    %1144 = vsyncpa %s1143, 1

</llo_original>
